<compile_context>
chip_gen: v7x
topology: tpu7x:2x2x1
jax: 0.10.0
libtpu: 0.0.40
codegen_flags: <defaults>
</compile_context>

<pallas_src>
import jax
import jax.numpy as jnp
from jax.experimental import pallas as pl
from jax.experimental.pallas import tpu as pltpu

D_IN = 768     # feature dim consumed by dis_model's first Linear
D_HID = 128    # dis_model hidden width


def net_kernel(x_ref, wd_ref, bd_ref, w1_ref, b1_ref, w2_ref, b2_ref, o_ref):
    """One batch tile: dir Linear (MXU), dis MLP (MXU + VPU), residual fusion."""
    x = x_ref[...]                           # (tb, 768) f32 (kept f32 for residual)
    x_bf = x.astype(jnp.bfloat16)            # bf16 operands for the MXU matmuls

    # dir = x @ Wd + bd      (bf16 x bf16 -> f32 accumulation on the MXU)
    dirv = jnp.dot(x_bf, wd_ref[...], preferred_element_type=jnp.float32) + bd_ref[...]

    # h = relu(x @ W1 + b1)
    h = jnp.dot(x_bf, w1_ref[...], preferred_element_type=jnp.float32) + b1_ref[...]
    h = jnp.maximum(h, 0.0)

    # score = h @ W2 + b2, with W2 stored transposed as a (1, 128) row.
    # A (tb,128)@(128,1) matmul would waste the MXU; a VPU multiply + lane
    # reduction runs in otherwise-idle slots while the dir matmul owns the MXU.
    s = jnp.sum(h * w2_ref[...], axis=-1, keepdims=True) + b2_ref[...]   # (tb, 1)

    # output = x + dir * score   (f32 residual; score broadcasts over 768 lanes)
    o_ref[...] = x + dirv * s


@jax.jit
def net_forward(x, wd, bd, w1, b1, w2, b2):
    """x: (B, 768) f32.  Weights use (in, out) layout: wd (768,768), w1 (768,128),
    w2 (128,1); biases bd (768,), b1 (128,), b2 (1,).  Returns (B, 768) f32."""
    B, D = x.shape
    assert D == D_IN

    # Batch tiling: single block for small batches, 256-row tiles otherwise.
    if B <= 256:
        tb, b_pad = B, B
    else:
        tb = 256
        b_pad = tb * pl.cdiv(B, tb)
    if b_pad != B:
        x = jnp.pad(x, ((0, b_pad - B), (0, 0)))

    # Weight/bias prep (layout plumbing only): bf16 weights for the MXU,
    # 2-D bias rows, W2 transposed to a lane-dense (1, 128) row.
    wd_bf = wd.astype(jnp.bfloat16)                          # (768, 768)
    w1_bf = w1.astype(jnp.bfloat16)                          # (768, 128)
    bd2 = bd.reshape(1, D_IN).astype(jnp.float32)            # (1, 768)
    b12 = b1.reshape(1, D_HID).astype(jnp.float32)           # (1, 128)
    w2r = w2.reshape(D_HID, 1).T.astype(jnp.float32)         # (1, 128)
    b22 = b2.reshape(1, 1).astype(jnp.float32)               # (1, 1)

    out = pl.pallas_call(
        net_kernel,
        out_shape=jax.ShapeDtypeStruct((b_pad, D_IN), x.dtype),
        grid_spec=pltpu.PrefetchScalarGridSpec(
            num_scalar_prefetch=0,
            grid=(b_pad // tb,),
            in_specs=[
                pl.BlockSpec((tb, D_IN), lambda i: (i, 0)),        # x tile
                pl.BlockSpec((D_IN, D_IN), lambda i: (0, 0)),      # W_dir (bf16)
                pl.BlockSpec((1, D_IN), lambda i: (0, 0)),         # b_dir
                pl.BlockSpec((D_IN, D_HID), lambda i: (0, 0)),     # W1 (bf16)
                pl.BlockSpec((1, D_HID), lambda i: (0, 0)),        # b1
                pl.BlockSpec((1, D_HID), lambda i: (0, 0)),        # W2 row (transposed)
                pl.BlockSpec((1, 1), lambda i: (0, 0)),            # b2
            ],
            out_specs=pl.BlockSpec((tb, D_IN), lambda i: (i, 0)),
        ),
        compiler_params=pltpu.CompilerParams(
            dimension_semantics=("parallel",)),
    )(x, wd_bf, bd2, w1_bf, b12, w2r, b22)

    return out[:B] if b_pad != B else out


def reference_forward(x, wd, bd, w1, b1, w2, b2):
    dirv = x @ wd + bd.reshape(1, -1)
    h = jnp.maximum(x @ w1 + b1.reshape(1, -1), 0.0)
    s = h @ w2.reshape(D_HID, 1) + b2.reshape(1, 1)
    return x + dirv * s


if __name__ == "__main__":
    key = jax.random.PRNGKey(0)
    k_x, k_wd, k_bd, k_w1, k_b1, k_w2, k_b2 = jax.random.split(key, 7)

    B = 16  # small batch of 768-dim CLIP features
    x = jax.random.normal(k_x, (B, D_IN), dtype=jnp.float32)

    # Deterministic synthetic parameters (scaled down for numerical sanity).
    wd = jax.random.normal(k_wd, (D_IN, D_IN), dtype=jnp.float32) * 0.02
    bd = jax.random.normal(k_bd, (D_IN,), dtype=jnp.float32) * 0.02
    w1 = jax.random.normal(k_w1, (D_IN, D_HID), dtype=jnp.float32) * 0.02
    b1 = jax.random.normal(k_b1, (D_HID,), dtype=jnp.float32) * 0.02
    w2 = jax.random.normal(k_w2, (D_HID, 1), dtype=jnp.float32) * 0.02
    b2 = jax.random.normal(k_b2, (1,), dtype=jnp.float32) * 0.02

    out = net_forward(x, wd, bd, w1, b1, w2, b2)
    out = jax.block_until_ready(out)

    ref = reference_forward(x, wd, bd, w1, b1, w2, b2)
    assert out.shape == (B, D_IN)
    # bf16 matmul operands (f32 accumulation) vs. the f32 reference: loosened tol.
    assert jnp.allclose(out, ref, atol=5e-2, rtol=5e-2)

    print("KERNEL_OK")
</pallas_src>

<mosaic_0001>
module attributes {stable_mosaic.version = 11 : i64} {
  func.func @net_kernel(%arg0: i32, %arg1: memref<16x768xf32, #tpu.memory_space<vmem>>, %arg2: memref<768x768xbf16, #tpu.memory_space<vmem>>, %arg3: memref<1x768xf32, #tpu.memory_space<vmem>>, %arg4: memref<768x128xbf16, #tpu.memory_space<vmem>>, %arg5: memref<1x128xf32, #tpu.memory_space<vmem>>, %arg6: memref<1x128xf32, #tpu.memory_space<vmem>>, %arg7: memref<1x1xf32, #tpu.memory_space<vmem>>, %arg8: memref<16x768xf32, #tpu.memory_space<vmem>>) attributes {dimension_semantics = [#tpu.dimension_semantics<parallel>], iteration_bounds = array<i64: 1>, scalar_prefetch = 0 : i64, scratch_operands = 0 : i64, tpu.core_type = #tpu.core_type<tc>, window_params = [{transform_indices = @transform_0, window_bounds = array<i64: 16, 768>}, {pipeline_mode = #tpu.pipeline_mode<synchronous>, transform_indices = @transform_1, window_bounds = array<i64: 768, 768>}, {pipeline_mode = #tpu.pipeline_mode<synchronous>, transform_indices = @transform_2, window_bounds = array<i64: 1, 768>}, {pipeline_mode = #tpu.pipeline_mode<synchronous>, transform_indices = @transform_3, window_bounds = array<i64: 768, 128>}, {pipeline_mode = #tpu.pipeline_mode<synchronous>, transform_indices = @transform_4, window_bounds = array<i64: 1, 128>}, {pipeline_mode = #tpu.pipeline_mode<synchronous>, transform_indices = @transform_5, window_bounds = array<i64: 1, 128>}, {pipeline_mode = #tpu.pipeline_mode<synchronous>, transform_indices = @transform_6, window_bounds = array<i64: 1, 1>}, {transform_indices = @transform_7, window_bounds = array<i64: 16, 768>}]} {
    %c0 = arith.constant 0 : index
    %c0_0 = arith.constant 0 : index
    %0 = vector.load %arg1[%c0, %c0_0] : memref<16x768xf32, #tpu.memory_space<vmem>>, vector<16x768xf32>
    %1 = arith.truncf %0 : vector<16x768xf32> to vector<16x768xbf16>
    %c0_1 = arith.constant 0 : index
    %c0_2 = arith.constant 0 : index
    %2 = vector.load %arg2[%c0_1, %c0_2] : memref<768x768xbf16, #tpu.memory_space<vmem>>, vector<768x768xbf16>
    %cst = arith.constant dense<0.000000e+00> : vector<16x768xf32>
    %3 = tpu.matmul %1, %2, %cst {dimension_numbers = #tpu.dot_dimension_numbers<[1], [0], [0], [1], [0, 0, 1, 1], [], []>} : vector<16x768xbf16>, vector<768x768xbf16>, vector<16x768xf32> -> vector<16x768xf32>
    %c0_3 = arith.constant 0 : index
    %c0_4 = arith.constant 0 : index
    %4 = vector.load %arg3[%c0_3, %c0_4] : memref<1x768xf32, #tpu.memory_space<vmem>>, vector<1x768xf32>
    %5 = vector.broadcast %4 : vector<1x768xf32> to vector<16x768xf32>
    %6 = arith.addf %3, %5 : vector<16x768xf32>
    %c0_5 = arith.constant 0 : index
    %c0_6 = arith.constant 0 : index
    %7 = vector.load %arg4[%c0_5, %c0_6] : memref<768x128xbf16, #tpu.memory_space<vmem>>, vector<768x128xbf16>
    %cst_7 = arith.constant dense<0.000000e+00> : vector<16x128xf32>
    %8 = tpu.matmul %1, %7, %cst_7 {dimension_numbers = #tpu.dot_dimension_numbers<[1], [0], [0], [1], [0, 0, 1, 1], [], []>} : vector<16x768xbf16>, vector<768x128xbf16>, vector<16x128xf32> -> vector<16x128xf32>
    %c0_8 = arith.constant 0 : index
    %c0_9 = arith.constant 0 : index
    %9 = vector.load %arg5[%c0_8, %c0_9] : memref<1x128xf32, #tpu.memory_space<vmem>>, vector<1x128xf32>
    %10 = vector.broadcast %9 : vector<1x128xf32> to vector<16x128xf32>
    %11 = arith.addf %8, %10 : vector<16x128xf32>
    %cst_10 = arith.constant 0.000000e+00 : f32
    %12 = vector.broadcast %cst_10 : f32 to vector<16x128xf32>
    %13 = arith.maximumf %11, %12 : vector<16x128xf32>
    %c0_11 = arith.constant 0 : index
    %c0_12 = arith.constant 0 : index
    %14 = vector.load %arg6[%c0_11, %c0_12] : memref<1x128xf32, #tpu.memory_space<vmem>>, vector<1x128xf32>
    %15 = vector.broadcast %14 : vector<1x128xf32> to vector<16x128xf32>
    %16 = arith.mulf %13, %15 : vector<16x128xf32>
    %cst_13 = arith.constant dense<0.000000e+00> : vector<16xf32>
    %17 = vector.multi_reduction <add>, %16, %cst_13 [1] : vector<16x128xf32> to vector<16xf32>
    %18 = vector.shape_cast %17 : vector<16xf32> to vector<16x1xf32>
    %c0_14 = arith.constant 0 : index
    %c0_15 = arith.constant 0 : index
    %19 = vector.load %arg7[%c0_14, %c0_15] : memref<1x1xf32, #tpu.memory_space<vmem>>, vector<1x1xf32>
    %20 = vector.broadcast %19 : vector<1x1xf32> to vector<16x1xf32>
    %21 = arith.addf %18, %20 : vector<16x1xf32>
    %22 = vector.broadcast %21 : vector<16x1xf32> to vector<16x768xf32>
    %23 = arith.mulf %6, %22 : vector<16x768xf32>
    %24 = arith.addf %0, %23 : vector<16x768xf32>
    %c0_16 = arith.constant 0 : index
    %c0_17 = arith.constant 0 : index
    %25 = vector.load %arg8[%c0_16, %c0_17] : memref<16x768xf32, #tpu.memory_space<vmem>>, vector<16x768xf32>
    tpu.vector_store %arg8[%c0_16, %c0_17], %24 {strides = array<i32>} : memref<16x768xf32, #tpu.memory_space<vmem>>, vector<16x768xf32>,
    return
  }
  func.func @transform_0(%arg0: i32) -> (i32, i32) {
    %c0_i32 = arith.constant 0 : i32
    %c0_i32_0 = arith.constant 0 : i32
    return %arg0, %c0_i32 : i32, i32
  }
  func.func @transform_1(%arg0: i32) -> (i32, i32) {
    %c0_i32 = arith.constant 0 : i32
    %c0_i32_0 = arith.constant 0 : i32
    %c0_i32_1 = arith.constant 0 : i32
    return %c0_i32, %c0_i32_0 : i32, i32
  }
  func.func @transform_2(%arg0: i32) -> (i32, i32) {
    %c0_i32 = arith.constant 0 : i32
    %c0_i32_0 = arith.constant 0 : i32
    %c0_i32_1 = arith.constant 0 : i32
    return %c0_i32, %c0_i32_0 : i32, i32
  }
  func.func @transform_3(%arg0: i32) -> (i32, i32) {
    %c0_i32 = arith.constant 0 : i32
    %c0_i32_0 = arith.constant 0 : i32
    %c0_i32_1 = arith.constant 0 : i32
    return %c0_i32, %c0_i32_0 : i32, i32
  }
  func.func @transform_4(%arg0: i32) -> (i32, i32) {
    %c0_i32 = arith.constant 0 : i32
    %c0_i32_0 = arith.constant 0 : i32
    %c0_i32_1 = arith.constant 0 : i32
    return %c0_i32, %c0_i32_0 : i32, i32
  }
  func.func @transform_5(%arg0: i32) -> (i32, i32) {
    %c0_i32 = arith.constant 0 : i32
    %c0_i32_0 = arith.constant 0 : i32
    %c0_i32_1 = arith.constant 0 : i32
    return %c0_i32, %c0_i32_0 : i32, i32
  }
  func.func @transform_6(%arg0: i32) -> (i32, i32) {
    %c0_i32 = arith.constant 0 : i32
    %c0_i32_0 = arith.constant 0 : i32
    %c0_i32_1 = arith.constant 0 : i32
    return %c0_i32, %c0_i32_0 : i32, i32
  }
  func.func @transform_7(%arg0: i32) -> (i32, i32) {
    %c0_i32 = arith.constant 0 : i32
    %c0_i32_0 = arith.constant 0 : i32
    return %arg0, %c0_i32 : i32, i32
  }
}

</mosaic_0001>

<llo_original>
// kernel: net_forward.1
$region0: #{net_forward.1}
  #allocation0 [shape = 'u32[]', space=smem, size = 0x4, offset = 0x4, fixed_abs, tag = 'smem constant byte address 0x4 - core index']
  #allocation1 [shape = 'u32[144,128]{1,0:T(1,128)}', space=vmem, size = 0x12000, scoped, tag = 'internal scratch']
  #allocation2 [shape = 'f32[1,1]{1,0:T(1,128)S(1)}', space=vmem, size = 0x200, scoped, tag = 'scoped memory for net_forward.1']
  %s0 = inlined_call_operand.vmem [shape: f32[16,768], index: 0, kind: input, shape index: {}]
  %s1 = inlined_call_operand.vmem [shape: bf16[768,768], index: 1, kind: input, shape index: {}]
  %s2 = inlined_call_operand.vmem [shape: f32[1,768], index: 2, kind: input, shape index: {}]
  %s3 = inlined_call_operand.vmem [shape: bf16[768,128], index: 3, kind: input, shape index: {}]
  %s4 = inlined_call_operand.vmem [shape: f32[1,128], index: 4, kind: input, shape index: {}]
  %s5 = inlined_call_operand.vmem [shape: f32[1,128], index: 5, kind: input, shape index: {}]
  %s6 = inlined_call_operand.<no memory space> [shape: f32[1,1], index: 6, kind: input, shape index: {}]
  %s7 = inlined_call_operand.hbm [shape: f32[16,768], index: 7, kind: output, shape index: {}]
  %s8 = sld [smem:[#allocation0]]
  $region38: #{net_forward.1} parent=0
    _
  %s10 = ssub.s32 1, %s8
  %s11 = scalar_select 0, %s10, %s8
  %v12 = vstv %s6
  %13 = vst [vmem:[#allocation2] sm:$0x1] %v12
  $region1: #{net_forward.1} parent=0
    #allocation3 [shape = 'u8[49152]{0}', space=vmem, size = 0xc000, scoped, tag = 'output window, operand 0, single buffered']
    #allocation4 [shape = 's32[1]{0}', space=sflag, size = 0x4, scoped, tag = 'scoped memory for net_forward.1']
    %14 = vsyncpa [#allocation4], 0
    // Predicated region
    $region2: #{net_forward.1} parent=1 // pred_check
      _
    $region3: #{net_forward.1} parent=1 // pred_check_branch
      %16 = sbr.rel (0) target = $region5
    $region4: #{net_forward.1} parent=1 // pred_region
      _
    $region5: #{net_forward.1} parent=1 // pred_fallthru
      _
    // Predicated region
    $region6: #{net_forward.1} parent=1 // pred_check
      _
    $region7: #{net_forward.1} parent=1 // pred_check_branch
      %18 = sbr.rel (0) target = $region9
    $region8: #{net_forward.1} parent=1 // pred_region
      _
    $region9: #{net_forward.1} parent=1 // pred_fallthru
      _
    // Predicated region
    $region10: #{net_forward.1} parent=1 // pred_check
      _
    $region11: #{net_forward.1} parent=1 // pred_check_branch
      %20 = sbr.rel (0) target = $region13
    $region12: #{net_forward.1} parent=1 // pred_region
      _
    $region13: #{net_forward.1} parent=1 // pred_fallthru
      _
    // Predicated region
    $region14: #{net_forward.1} parent=1 // pred_check
      _
    $region15: #{net_forward.1} parent=1 // pred_check_branch
      %22 = sbr.rel (0) target = $region17
    $region16: #{net_forward.1} parent=1 // pred_region
      _
    $region17: #{net_forward.1} parent=1 // pred_fallthru
      _
    // Predicated region
    $region18: #{net_forward.1} parent=1 // pred_check
      _
    $region19: #{net_forward.1} parent=1 // pred_check_branch
      %24 = sbr.rel (0) target = $region21
    $region20: #{net_forward.1} parent=1 // pred_region
      _
    $region21: #{net_forward.1} parent=1 // pred_fallthru
      _
    // Predicated region
    $region22: #{net_forward.1} parent=1 // pred_check
      _
    $region23: #{net_forward.1} parent=1 // pred_check_branch
      %26 = sbr.rel (0) target = $region25
    $region24: #{net_forward.1} parent=1 // pred_region
      _
    $region25: #{net_forward.1} parent=1 // pred_fallthru
      _
    // Predicated region
    $region26: #{net_forward.1} parent=1 // pred_check
      _
    $region27: #{net_forward.1} parent=1 // pred_check_branch
      %28 = sbr.rel (0) target = $region29
    $region28: #{net_forward.1} parent=1 // pred_region
      _
    $region29: #{net_forward.1} parent=1 // pred_fallthru
      _
    %v30 = vld [vmem:[%s0] sm:$0xff]
    %v31 = vld [vmem:[%s0 + $0x8] sm:$0xff]
    %v32 = vld [vmem:[%s0 + $0x10] sm:$0xff]
    %v33 = vld [vmem:[%s0 + $0x18] sm:$0xff]
    %v34 = vld [vmem:[%s0 + $0x20] sm:$0xff]
    %v35 = vld [vmem:[%s0 + $0x28] sm:$0xff]
    %v36 = vld [vmem:[%s0 + $0x30] sm:$0xff]
    %v37 = vld [vmem:[%s0 + $0x38] sm:$0xff]
    %v38 = vld [vmem:[%s0 + $0x40] sm:$0xff]
    %v39 = vld [vmem:[%s0 + $0x48] sm:$0xff]
    %v40 = vld [vmem:[%s0 + $0x50] sm:$0xff]
    %v41 = vld [vmem:[%s0 + $0x58] sm:$0xff]
    %v42 = vpack.c.bf16 %v36, %v30
    %v43 = vpack.c.bf16 %v37, %v31
    %v44 = vpack.c.bf16 %v38, %v32
    %v45 = vpack.c.bf16 %v39, %v33
    %v46 = vpack.c.bf16 %v40, %v34
    %v47 = vpack.c.bf16 %v41, %v35
    %v48 = vld [vmem:[%s1] sm:$0xff]
    %v49 = vld [vmem:[%s1 + $0x8] sm:$0xff]
    %v50 = vld [vmem:[%s1 + $0x10] sm:$0xff]
    %v51 = vld [vmem:[%s1 + $0x18] sm:$0xff]
    %v52 = vld [vmem:[%s1 + $0x20] sm:$0xff]
    %v53 = vld [vmem:[%s1 + $0x28] sm:$0xff]
    %v54 = vld [vmem:[%s1 + $0x30] sm:$0xff]
    %v55 = vld [vmem:[%s1 + $0x38] sm:$0xff]
    %v56 = vld [vmem:[%s1 + $0x40] sm:$0xff]
    %v57 = vld [vmem:[%s1 + $0x48] sm:$0xff]
    %v58 = vld [vmem:[%s1 + $0x50] sm:$0xff]
    %v59 = vld [vmem:[%s1 + $0x58] sm:$0xff]
    %v60 = vld [vmem:[%s1 + $0x60] sm:$0xff]
    %v61 = vld [vmem:[%s1 + $0x68] sm:$0xff]
    %v62 = vld [vmem:[%s1 + $0x70] sm:$0xff]
    %v63 = vld [vmem:[%s1 + $0x78] sm:$0xff]
    %v64 = vld [vmem:[%s1 + $0x80] sm:$0xff]
    %v65 = vld [vmem:[%s1 + $0x88] sm:$0xff]
    %v66 = vld [vmem:[%s1 + $0x90] sm:$0xff]
    %v67 = vld [vmem:[%s1 + $0x98] sm:$0xff]
    %v68 = vld [vmem:[%s1 + $0xa0] sm:$0xff]
    %v69 = vld [vmem:[%s1 + $0xa8] sm:$0xff]
    %v70 = vld [vmem:[%s1 + $0xb0] sm:$0xff]
    %v71 = vld [vmem:[%s1 + $0xb8] sm:$0xff]
    %v72 = vld [vmem:[%s1 + $0xc0] sm:$0xff]
    %v73 = vld [vmem:[%s1 + $0xc8] sm:$0xff]
    %v74 = vld [vmem:[%s1 + $0xd0] sm:$0xff]
    %v75 = vld [vmem:[%s1 + $0xd8] sm:$0xff]
    %v76 = vld [vmem:[%s1 + $0xe0] sm:$0xff]
    %v77 = vld [vmem:[%s1 + $0xe8] sm:$0xff]
    %v78 = vld [vmem:[%s1 + $0xf0] sm:$0xff]
    %v79 = vld [vmem:[%s1 + $0xf8] sm:$0xff]
    %v80 = vld [vmem:[%s1 + $0x100] sm:$0xff]
    %v81 = vld [vmem:[%s1 + $0x108] sm:$0xff]
    %v82 = vld [vmem:[%s1 + $0x110] sm:$0xff]
    %v83 = vld [vmem:[%s1 + $0x118] sm:$0xff]
    %v84 = vld [vmem:[%s1 + $0x120] sm:$0xff]
    %v85 = vld [vmem:[%s1 + $0x128] sm:$0xff]
    %v86 = vld [vmem:[%s1 + $0x130] sm:$0xff]
    %v87 = vld [vmem:[%s1 + $0x138] sm:$0xff]
    %v88 = vld [vmem:[%s1 + $0x140] sm:$0xff]
    %v89 = vld [vmem:[%s1 + $0x148] sm:$0xff]
    %v90 = vld [vmem:[%s1 + $0x150] sm:$0xff]
    %v91 = vld [vmem:[%s1 + $0x158] sm:$0xff]
    %v92 = vld [vmem:[%s1 + $0x160] sm:$0xff]
    %v93 = vld [vmem:[%s1 + $0x168] sm:$0xff]
    %v94 = vld [vmem:[%s1 + $0x170] sm:$0xff]
    %v95 = vld [vmem:[%s1 + $0x178] sm:$0xff]
    %v96 = vld [vmem:[%s1 + $0x180] sm:$0xff]
    %v97 = vld [vmem:[%s1 + $0x188] sm:$0xff]
    %v98 = vld [vmem:[%s1 + $0x190] sm:$0xff]
    %v99 = vld [vmem:[%s1 + $0x198] sm:$0xff]
    %v100 = vld [vmem:[%s1 + $0x1a0] sm:$0xff]
    %v101 = vld [vmem:[%s1 + $0x1a8] sm:$0xff]
    %v102 = vld [vmem:[%s1 + $0x1b0] sm:$0xff]
    %v103 = vld [vmem:[%s1 + $0x1b8] sm:$0xff]
    %v104 = vld [vmem:[%s1 + $0x1c0] sm:$0xff]
    %v105 = vld [vmem:[%s1 + $0x1c8] sm:$0xff]
    %v106 = vld [vmem:[%s1 + $0x1d0] sm:$0xff]
    %v107 = vld [vmem:[%s1 + $0x1d8] sm:$0xff]
    %v108 = vld [vmem:[%s1 + $0x1e0] sm:$0xff]
    %v109 = vld [vmem:[%s1 + $0x1e8] sm:$0xff]
    %v110 = vld [vmem:[%s1 + $0x1f0] sm:$0xff]
    %v111 = vld [vmem:[%s1 + $0x1f8] sm:$0xff]
    %v112 = vld [vmem:[%s1 + $0x200] sm:$0xff]
    %v113 = vld [vmem:[%s1 + $0x208] sm:$0xff]
    %v114 = vld [vmem:[%s1 + $0x210] sm:$0xff]
    %v115 = vld [vmem:[%s1 + $0x218] sm:$0xff]
    %v116 = vld [vmem:[%s1 + $0x220] sm:$0xff]
    %v117 = vld [vmem:[%s1 + $0x228] sm:$0xff]
    %v118 = vld [vmem:[%s1 + $0x230] sm:$0xff]
    %v119 = vld [vmem:[%s1 + $0x238] sm:$0xff]
    %v120 = vld [vmem:[%s1 + $0x240] sm:$0xff]
    %v121 = vld [vmem:[%s1 + $0x248] sm:$0xff]
    %v122 = vld [vmem:[%s1 + $0x250] sm:$0xff]
    %v123 = vld [vmem:[%s1 + $0x258] sm:$0xff]
    %v124 = vld [vmem:[%s1 + $0x260] sm:$0xff]
    %v125 = vld [vmem:[%s1 + $0x268] sm:$0xff]
    %v126 = vld [vmem:[%s1 + $0x270] sm:$0xff]
    %v127 = vld [vmem:[%s1 + $0x278] sm:$0xff]
    %v128 = vld [vmem:[%s1 + $0x280] sm:$0xff]
    %v129 = vld [vmem:[%s1 + $0x288] sm:$0xff]
    %v130 = vld [vmem:[%s1 + $0x290] sm:$0xff]
    %v131 = vld [vmem:[%s1 + $0x298] sm:$0xff]
    %v132 = vld [vmem:[%s1 + $0x2a0] sm:$0xff]
    %v133 = vld [vmem:[%s1 + $0x2a8] sm:$0xff]
    %v134 = vld [vmem:[%s1 + $0x2b0] sm:$0xff]
    %v135 = vld [vmem:[%s1 + $0x2b8] sm:$0xff]
    %v136 = vld [vmem:[%s1 + $0x2c0] sm:$0xff]
    %v137 = vld [vmem:[%s1 + $0x2c8] sm:$0xff]
    %v138 = vld [vmem:[%s1 + $0x2d0] sm:$0xff]
    %v139 = vld [vmem:[%s1 + $0x2d8] sm:$0xff]
    %v140 = vld [vmem:[%s1 + $0x2e0] sm:$0xff]
    %v141 = vld [vmem:[%s1 + $0x2e8] sm:$0xff]
    %v142 = vld [vmem:[%s1 + $0x2f0] sm:$0xff]
    %v143 = vld [vmem:[%s1 + $0x2f8] sm:$0xff]
    %v144 = vld [vmem:[%s1 + $0x300] sm:$0xff]
    %v145 = vld [vmem:[%s1 + $0x308] sm:$0xff]
    %v146 = vld [vmem:[%s1 + $0x310] sm:$0xff]
    %v147 = vld [vmem:[%s1 + $0x318] sm:$0xff]
    %v148 = vld [vmem:[%s1 + $0x320] sm:$0xff]
    %v149 = vld [vmem:[%s1 + $0x328] sm:$0xff]
    %v150 = vld [vmem:[%s1 + $0x330] sm:$0xff]
    %v151 = vld [vmem:[%s1 + $0x338] sm:$0xff]
    %v152 = vld [vmem:[%s1 + $0x340] sm:$0xff]
    %v153 = vld [vmem:[%s1 + $0x348] sm:$0xff]
    %v154 = vld [vmem:[%s1 + $0x350] sm:$0xff]
    %v155 = vld [vmem:[%s1 + $0x358] sm:$0xff]
    %v156 = vld [vmem:[%s1 + $0x360] sm:$0xff]
    %v157 = vld [vmem:[%s1 + $0x368] sm:$0xff]
    %v158 = vld [vmem:[%s1 + $0x370] sm:$0xff]
    %v159 = vld [vmem:[%s1 + $0x378] sm:$0xff]
    %v160 = vld [vmem:[%s1 + $0x380] sm:$0xff]
    %v161 = vld [vmem:[%s1 + $0x388] sm:$0xff]
    %v162 = vld [vmem:[%s1 + $0x390] sm:$0xff]
    %v163 = vld [vmem:[%s1 + $0x398] sm:$0xff]
    %v164 = vld [vmem:[%s1 + $0x3a0] sm:$0xff]
    %v165 = vld [vmem:[%s1 + $0x3a8] sm:$0xff]
    %v166 = vld [vmem:[%s1 + $0x3b0] sm:$0xff]
    %v167 = vld [vmem:[%s1 + $0x3b8] sm:$0xff]
    %v168 = vld [vmem:[%s1 + $0x3c0] sm:$0xff]
    %v169 = vld [vmem:[%s1 + $0x3c8] sm:$0xff]
    %v170 = vld [vmem:[%s1 + $0x3d0] sm:$0xff]
    %v171 = vld [vmem:[%s1 + $0x3d8] sm:$0xff]
    %v172 = vld [vmem:[%s1 + $0x3e0] sm:$0xff]
    %v173 = vld [vmem:[%s1 + $0x3e8] sm:$0xff]
    %v174 = vld [vmem:[%s1 + $0x3f0] sm:$0xff]
    %v175 = vld [vmem:[%s1 + $0x3f8] sm:$0xff]
    %v176 = vld [vmem:[%s1 + $0x400] sm:$0xff]
    %v177 = vld [vmem:[%s1 + $0x408] sm:$0xff]
    %v178 = vld [vmem:[%s1 + $0x410] sm:$0xff]
    %v179 = vld [vmem:[%s1 + $0x418] sm:$0xff]
    %v180 = vld [vmem:[%s1 + $0x420] sm:$0xff]
    %v181 = vld [vmem:[%s1 + $0x428] sm:$0xff]
    %v182 = vld [vmem:[%s1 + $0x430] sm:$0xff]
    %v183 = vld [vmem:[%s1 + $0x438] sm:$0xff]
    %v184 = vld [vmem:[%s1 + $0x440] sm:$0xff]
    %v185 = vld [vmem:[%s1 + $0x448] sm:$0xff]
    %v186 = vld [vmem:[%s1 + $0x450] sm:$0xff]
    %v187 = vld [vmem:[%s1 + $0x458] sm:$0xff]
    %v188 = vld [vmem:[%s1 + $0x460] sm:$0xff]
    %v189 = vld [vmem:[%s1 + $0x468] sm:$0xff]
    %v190 = vld [vmem:[%s1 + $0x470] sm:$0xff]
    %v191 = vld [vmem:[%s1 + $0x478] sm:$0xff]
    %v192 = vld [vmem:[%s1 + $0x480] sm:$0xff]
    %v193 = vld [vmem:[%s1 + $0x488] sm:$0xff]
    %v194 = vld [vmem:[%s1 + $0x490] sm:$0xff]
    %v195 = vld [vmem:[%s1 + $0x498] sm:$0xff]
    %v196 = vld [vmem:[%s1 + $0x4a0] sm:$0xff]
    %v197 = vld [vmem:[%s1 + $0x4a8] sm:$0xff]
    %v198 = vld [vmem:[%s1 + $0x4b0] sm:$0xff]
    %v199 = vld [vmem:[%s1 + $0x4b8] sm:$0xff]
    %v200 = vld [vmem:[%s1 + $0x4c0] sm:$0xff]
    %v201 = vld [vmem:[%s1 + $0x4c8] sm:$0xff]
    %v202 = vld [vmem:[%s1 + $0x4d0] sm:$0xff]
    %v203 = vld [vmem:[%s1 + $0x4d8] sm:$0xff]
    %v204 = vld [vmem:[%s1 + $0x4e0] sm:$0xff]
    %v205 = vld [vmem:[%s1 + $0x4e8] sm:$0xff]
    %v206 = vld [vmem:[%s1 + $0x4f0] sm:$0xff]
    %v207 = vld [vmem:[%s1 + $0x4f8] sm:$0xff]
    %v208 = vld [vmem:[%s1 + $0x500] sm:$0xff]
    %v209 = vld [vmem:[%s1 + $0x508] sm:$0xff]
    %v210 = vld [vmem:[%s1 + $0x510] sm:$0xff]
    %v211 = vld [vmem:[%s1 + $0x518] sm:$0xff]
    %v212 = vld [vmem:[%s1 + $0x520] sm:$0xff]
    %v213 = vld [vmem:[%s1 + $0x528] sm:$0xff]
    %v214 = vld [vmem:[%s1 + $0x530] sm:$0xff]
    %v215 = vld [vmem:[%s1 + $0x538] sm:$0xff]
    %v216 = vld [vmem:[%s1 + $0x540] sm:$0xff]
    %v217 = vld [vmem:[%s1 + $0x548] sm:$0xff]
    %v218 = vld [vmem:[%s1 + $0x550] sm:$0xff]
    %v219 = vld [vmem:[%s1 + $0x558] sm:$0xff]
    %v220 = vld [vmem:[%s1 + $0x560] sm:$0xff]
    %v221 = vld [vmem:[%s1 + $0x568] sm:$0xff]
    %v222 = vld [vmem:[%s1 + $0x570] sm:$0xff]
    %v223 = vld [vmem:[%s1 + $0x578] sm:$0xff]
    %v224 = vld [vmem:[%s1 + $0x580] sm:$0xff]
    %v225 = vld [vmem:[%s1 + $0x588] sm:$0xff]
    %v226 = vld [vmem:[%s1 + $0x590] sm:$0xff]
    %v227 = vld [vmem:[%s1 + $0x598] sm:$0xff]
    %v228 = vld [vmem:[%s1 + $0x5a0] sm:$0xff]
    %v229 = vld [vmem:[%s1 + $0x5a8] sm:$0xff]
    %v230 = vld [vmem:[%s1 + $0x5b0] sm:$0xff]
    %v231 = vld [vmem:[%s1 + $0x5b8] sm:$0xff]
    %v232 = vld [vmem:[%s1 + $0x5c0] sm:$0xff]
    %v233 = vld [vmem:[%s1 + $0x5c8] sm:$0xff]
    %v234 = vld [vmem:[%s1 + $0x5d0] sm:$0xff]
    %v235 = vld [vmem:[%s1 + $0x5d8] sm:$0xff]
    %v236 = vld [vmem:[%s1 + $0x5e0] sm:$0xff]
    %v237 = vld [vmem:[%s1 + $0x5e8] sm:$0xff]
    %v238 = vld [vmem:[%s1 + $0x5f0] sm:$0xff]
    %v239 = vld [vmem:[%s1 + $0x5f8] sm:$0xff]
    %v240 = vld [vmem:[%s1 + $0x600] sm:$0xff]
    %v241 = vld [vmem:[%s1 + $0x608] sm:$0xff]
    %v242 = vld [vmem:[%s1 + $0x610] sm:$0xff]
    %v243 = vld [vmem:[%s1 + $0x618] sm:$0xff]
    %v244 = vld [vmem:[%s1 + $0x620] sm:$0xff]
    %v245 = vld [vmem:[%s1 + $0x628] sm:$0xff]
    %v246 = vld [vmem:[%s1 + $0x630] sm:$0xff]
    %v247 = vld [vmem:[%s1 + $0x638] sm:$0xff]
    %v248 = vld [vmem:[%s1 + $0x640] sm:$0xff]
    %v249 = vld [vmem:[%s1 + $0x648] sm:$0xff]
    %v250 = vld [vmem:[%s1 + $0x650] sm:$0xff]
    %v251 = vld [vmem:[%s1 + $0x658] sm:$0xff]
    %v252 = vld [vmem:[%s1 + $0x660] sm:$0xff]
    %v253 = vld [vmem:[%s1 + $0x668] sm:$0xff]
    %v254 = vld [vmem:[%s1 + $0x670] sm:$0xff]
    %v255 = vld [vmem:[%s1 + $0x678] sm:$0xff]
    %v256 = vld [vmem:[%s1 + $0x680] sm:$0xff]
    %v257 = vld [vmem:[%s1 + $0x688] sm:$0xff]
    %v258 = vld [vmem:[%s1 + $0x690] sm:$0xff]
    %v259 = vld [vmem:[%s1 + $0x698] sm:$0xff]
    %v260 = vld [vmem:[%s1 + $0x6a0] sm:$0xff]
    %v261 = vld [vmem:[%s1 + $0x6a8] sm:$0xff]
    %v262 = vld [vmem:[%s1 + $0x6b0] sm:$0xff]
    %v263 = vld [vmem:[%s1 + $0x6b8] sm:$0xff]
    %v264 = vld [vmem:[%s1 + $0x6c0] sm:$0xff]
    %v265 = vld [vmem:[%s1 + $0x6c8] sm:$0xff]
    %v266 = vld [vmem:[%s1 + $0x6d0] sm:$0xff]
    %v267 = vld [vmem:[%s1 + $0x6d8] sm:$0xff]
    %v268 = vld [vmem:[%s1 + $0x6e0] sm:$0xff]
    %v269 = vld [vmem:[%s1 + $0x6e8] sm:$0xff]
    %v270 = vld [vmem:[%s1 + $0x6f0] sm:$0xff]
    %v271 = vld [vmem:[%s1 + $0x6f8] sm:$0xff]
    %v272 = vld [vmem:[%s1 + $0x700] sm:$0xff]
    %v273 = vld [vmem:[%s1 + $0x708] sm:$0xff]
    %v274 = vld [vmem:[%s1 + $0x710] sm:$0xff]
    %v275 = vld [vmem:[%s1 + $0x718] sm:$0xff]
    %v276 = vld [vmem:[%s1 + $0x720] sm:$0xff]
    %v277 = vld [vmem:[%s1 + $0x728] sm:$0xff]
    %v278 = vld [vmem:[%s1 + $0x730] sm:$0xff]
    %v279 = vld [vmem:[%s1 + $0x738] sm:$0xff]
    %v280 = vld [vmem:[%s1 + $0x740] sm:$0xff]
    %v281 = vld [vmem:[%s1 + $0x748] sm:$0xff]
    %v282 = vld [vmem:[%s1 + $0x750] sm:$0xff]
    %v283 = vld [vmem:[%s1 + $0x758] sm:$0xff]
    %v284 = vld [vmem:[%s1 + $0x760] sm:$0xff]
    %v285 = vld [vmem:[%s1 + $0x768] sm:$0xff]
    %v286 = vld [vmem:[%s1 + $0x770] sm:$0xff]
    %v287 = vld [vmem:[%s1 + $0x778] sm:$0xff]
    %v288 = vld [vmem:[%s1 + $0x780] sm:$0xff]
    %v289 = vld [vmem:[%s1 + $0x788] sm:$0xff]
    %v290 = vld [vmem:[%s1 + $0x790] sm:$0xff]
    %v291 = vld [vmem:[%s1 + $0x798] sm:$0xff]
    %v292 = vld [vmem:[%s1 + $0x7a0] sm:$0xff]
    %v293 = vld [vmem:[%s1 + $0x7a8] sm:$0xff]
    %v294 = vld [vmem:[%s1 + $0x7b0] sm:$0xff]
    %v295 = vld [vmem:[%s1 + $0x7b8] sm:$0xff]
    %v296 = vld [vmem:[%s1 + $0x7c0] sm:$0xff]
    %v297 = vld [vmem:[%s1 + $0x7c8] sm:$0xff]
    %v298 = vld [vmem:[%s1 + $0x7d0] sm:$0xff]
    %v299 = vld [vmem:[%s1 + $0x7d8] sm:$0xff]
    %v300 = vld [vmem:[%s1 + $0x7e0] sm:$0xff]
    %v301 = vld [vmem:[%s1 + $0x7e8] sm:$0xff]
    %v302 = vld [vmem:[%s1 + $0x7f0] sm:$0xff]
    %v303 = vld [vmem:[%s1 + $0x7f8] sm:$0xff]
    %v304 = vld [vmem:[%s1 + $0x800] sm:$0xff]
    %v305 = vld [vmem:[%s1 + $0x808] sm:$0xff]
    %v306 = vld [vmem:[%s1 + $0x810] sm:$0xff]
    %v307 = vld [vmem:[%s1 + $0x818] sm:$0xff]
    %v308 = vld [vmem:[%s1 + $0x820] sm:$0xff]
    %v309 = vld [vmem:[%s1 + $0x828] sm:$0xff]
    %v310 = vld [vmem:[%s1 + $0x830] sm:$0xff]
    %v311 = vld [vmem:[%s1 + $0x838] sm:$0xff]
    %v312 = vld [vmem:[%s1 + $0x840] sm:$0xff]
    %v313 = vld [vmem:[%s1 + $0x848] sm:$0xff]
    %v314 = vld [vmem:[%s1 + $0x850] sm:$0xff]
    %v315 = vld [vmem:[%s1 + $0x858] sm:$0xff]
    %v316 = vld [vmem:[%s1 + $0x860] sm:$0xff]
    %v317 = vld [vmem:[%s1 + $0x868] sm:$0xff]
    %v318 = vld [vmem:[%s1 + $0x870] sm:$0xff]
    %v319 = vld [vmem:[%s1 + $0x878] sm:$0xff]
    %v320 = vld [vmem:[%s1 + $0x880] sm:$0xff]
    %v321 = vld [vmem:[%s1 + $0x888] sm:$0xff]
    %v322 = vld [vmem:[%s1 + $0x890] sm:$0xff]
    %v323 = vld [vmem:[%s1 + $0x898] sm:$0xff]
    %v324 = vld [vmem:[%s1 + $0x8a0] sm:$0xff]
    %v325 = vld [vmem:[%s1 + $0x8a8] sm:$0xff]
    %v326 = vld [vmem:[%s1 + $0x8b0] sm:$0xff]
    %v327 = vld [vmem:[%s1 + $0x8b8] sm:$0xff]
    %v328 = vld [vmem:[%s1 + $0x8c0] sm:$0xff]
    %v329 = vld [vmem:[%s1 + $0x8c8] sm:$0xff]
    %v330 = vld [vmem:[%s1 + $0x8d0] sm:$0xff]
    %v331 = vld [vmem:[%s1 + $0x8d8] sm:$0xff]
    %v332 = vld [vmem:[%s1 + $0x8e0] sm:$0xff]
    %v333 = vld [vmem:[%s1 + $0x8e8] sm:$0xff]
    %v334 = vld [vmem:[%s1 + $0x8f0] sm:$0xff]
    %v335 = vld [vmem:[%s1 + $0x8f8] sm:$0xff]
    %v336 = vld [vmem:[%s2] sm:$0x3f]
    %v338 = vlaneseq
    %v339 = vshrl.u32 %v338, 7
    %v340 = vsub.s32 0, %v339
    %v341 = vrot.slane %v336, %v340
    %v342 = vlaneseq
    %v343 = vshrl.u32 %v342, 7
    %v344 = vsub.s32 1, %v343
    %v345 = vrot.slane %v336, %v344
    %v346 = vlaneseq
    %v347 = vshrl.u32 %v346, 7
    %v348 = vsub.s32 2, %v347
    %v349 = vrot.slane %v336, %v348
    %v350 = vlaneseq
    %v351 = vshrl.u32 %v350, 7
    %v352 = vsub.s32 3, %v351
    %v353 = vrot.slane %v336, %v352
    %v354 = vlaneseq
    %v355 = vshrl.u32 %v354, 7
    %v356 = vsub.s32 4, %v355
    %v357 = vrot.slane %v336, %v356
    %v358 = vlaneseq
    %v359 = vshrl.u32 %v358, 7
    %v360 = vsub.s32 5, %v359
    %v361 = vrot.slane %v336, %v360
    %v656 = vunpack.c.l.b16 %v48
    %v657 = vunpack.c.h.b16 %v48
    %v658 = vunpack.c.l.b16 %v49
    %v659 = vunpack.c.h.b16 %v49
    %v660 = vunpack.c.l.b16 %v50
    %v661 = vunpack.c.h.b16 %v50
    %v662 = vunpack.c.l.b16 %v51
    %v663 = vunpack.c.h.b16 %v51
    %v664 = vunpack.c.l.b16 %v52
    %v665 = vunpack.c.h.b16 %v52
    %v666 = vunpack.c.l.b16 %v53
    %v667 = vunpack.c.h.b16 %v53
    %v668 = vunpack.c.l.b16 %v54
    %v669 = vunpack.c.h.b16 %v54
    %v670 = vunpack.c.l.b16 %v55
    %v671 = vunpack.c.h.b16 %v55
    %v672 = vunpack.c.l.b16 %v56
    %v673 = vunpack.c.h.b16 %v56
    %v674 = vunpack.c.l.b16 %v57
    %v675 = vunpack.c.h.b16 %v57
    %v676 = vunpack.c.l.b16 %v58
    %v677 = vunpack.c.h.b16 %v58
    %v678 = vunpack.c.l.b16 %v59
    %v679 = vunpack.c.h.b16 %v59
    %v680 = vunpack.c.l.b16 %v60
    %v681 = vunpack.c.h.b16 %v60
    %v682 = vunpack.c.l.b16 %v61
    %v683 = vunpack.c.h.b16 %v61
    %v684 = vunpack.c.l.b16 %v62
    %v685 = vunpack.c.h.b16 %v62
    %v686 = vunpack.c.l.b16 %v63
    %v687 = vunpack.c.h.b16 %v63
    %v688 = vunpack.c.l.b16 %v64
    %v689 = vunpack.c.h.b16 %v64
    %v690 = vunpack.c.l.b16 %v65
    %v691 = vunpack.c.h.b16 %v65
    %v692 = vunpack.c.l.b16 %v66
    %v693 = vunpack.c.h.b16 %v66
    %v694 = vunpack.c.l.b16 %v67
    %v695 = vunpack.c.h.b16 %v67
    %v696 = vunpack.c.l.b16 %v68
    %v697 = vunpack.c.h.b16 %v68
    %v698 = vunpack.c.l.b16 %v69
    %v699 = vunpack.c.h.b16 %v69
    %v700 = vunpack.c.l.b16 %v70
    %v701 = vunpack.c.h.b16 %v70
    %v702 = vunpack.c.l.b16 %v71
    %v703 = vunpack.c.h.b16 %v71
    %v704 = vunpack.c.l.b16 %v72
    %v705 = vunpack.c.h.b16 %v72
    %v706 = vunpack.c.l.b16 %v73
    %v707 = vunpack.c.h.b16 %v73
    %v708 = vunpack.c.l.b16 %v74
    %v709 = vunpack.c.h.b16 %v74
    %v710 = vunpack.c.l.b16 %v75
    %v711 = vunpack.c.h.b16 %v75
    %v712 = vunpack.c.l.b16 %v76
    %v713 = vunpack.c.h.b16 %v76
    %v714 = vunpack.c.l.b16 %v77
    %v715 = vunpack.c.h.b16 %v77
    %v716 = vunpack.c.l.b16 %v78
    %v717 = vunpack.c.h.b16 %v78
    %v718 = vunpack.c.l.b16 %v79
    %v719 = vunpack.c.h.b16 %v79
    %v720 = vunpack.c.l.b16 %v80
    %v721 = vunpack.c.h.b16 %v80
    %v722 = vunpack.c.l.b16 %v81
    %v723 = vunpack.c.h.b16 %v81
    %v724 = vunpack.c.l.b16 %v82
    %v725 = vunpack.c.h.b16 %v82
    %v726 = vunpack.c.l.b16 %v83
    %v727 = vunpack.c.h.b16 %v83
    %v728 = vunpack.c.l.b16 %v84
    %v729 = vunpack.c.h.b16 %v84
    %v730 = vunpack.c.l.b16 %v85
    %v731 = vunpack.c.h.b16 %v85
    %v732 = vunpack.c.l.b16 %v86
    %v733 = vunpack.c.h.b16 %v86
    %v734 = vunpack.c.l.b16 %v87
    %v735 = vunpack.c.h.b16 %v87
    %v736 = vunpack.c.l.b16 %v88
    %v737 = vunpack.c.h.b16 %v88
    %v738 = vunpack.c.l.b16 %v89
    %v739 = vunpack.c.h.b16 %v89
    %v740 = vunpack.c.l.b16 %v90
    %v741 = vunpack.c.h.b16 %v90
    %v742 = vunpack.c.l.b16 %v91
    %v743 = vunpack.c.h.b16 %v91
    %v744 = vunpack.c.l.b16 %v92
    %v745 = vunpack.c.h.b16 %v92
    %v746 = vunpack.c.l.b16 %v93
    %v747 = vunpack.c.h.b16 %v93
    %v748 = vunpack.c.l.b16 %v94
    %v749 = vunpack.c.h.b16 %v94
    %v750 = vunpack.c.l.b16 %v95
    %v751 = vunpack.c.h.b16 %v95
    %v752 = vunpack.c.l.b16 %v96
    %v753 = vunpack.c.h.b16 %v96
    %v754 = vunpack.c.l.b16 %v97
    %v755 = vunpack.c.h.b16 %v97
    %v756 = vunpack.c.l.b16 %v98
    %v757 = vunpack.c.h.b16 %v98
    %v758 = vunpack.c.l.b16 %v99
    %v759 = vunpack.c.h.b16 %v99
    %v760 = vunpack.c.l.b16 %v100
    %v761 = vunpack.c.h.b16 %v100
    %v762 = vunpack.c.l.b16 %v101
    %v763 = vunpack.c.h.b16 %v101
    %v764 = vunpack.c.l.b16 %v102
    %v765 = vunpack.c.h.b16 %v102
    %v766 = vunpack.c.l.b16 %v103
    %v767 = vunpack.c.h.b16 %v103
    %v768 = vunpack.c.l.b16 %v104
    %v769 = vunpack.c.h.b16 %v104
    %v770 = vunpack.c.l.b16 %v105
    %v771 = vunpack.c.h.b16 %v105
    %v772 = vunpack.c.l.b16 %v106
    %v773 = vunpack.c.h.b16 %v106
    %v774 = vunpack.c.l.b16 %v107
    %v775 = vunpack.c.h.b16 %v107
    %v776 = vunpack.c.l.b16 %v108
    %v777 = vunpack.c.h.b16 %v108
    %v778 = vunpack.c.l.b16 %v109
    %v779 = vunpack.c.h.b16 %v109
    %v780 = vunpack.c.l.b16 %v110
    %v781 = vunpack.c.h.b16 %v110
    %v782 = vunpack.c.l.b16 %v111
    %v783 = vunpack.c.h.b16 %v111
    %v784 = vunpack.c.l.b16 %v112
    %v785 = vunpack.c.h.b16 %v112
    %v786 = vunpack.c.l.b16 %v113
    %v787 = vunpack.c.h.b16 %v113
    %v788 = vunpack.c.l.b16 %v114
    %v789 = vunpack.c.h.b16 %v114
    %v790 = vunpack.c.l.b16 %v115
    %v791 = vunpack.c.h.b16 %v115
    %v792 = vunpack.c.l.b16 %v116
    %v793 = vunpack.c.h.b16 %v116
    %v794 = vunpack.c.l.b16 %v117
    %v795 = vunpack.c.h.b16 %v117
    %v796 = vunpack.c.l.b16 %v118
    %v797 = vunpack.c.h.b16 %v118
    %v798 = vunpack.c.l.b16 %v119
    %v799 = vunpack.c.h.b16 %v119
    %v800 = vunpack.c.l.b16 %v120
    %v801 = vunpack.c.h.b16 %v120
    %v802 = vunpack.c.l.b16 %v121
    %v803 = vunpack.c.h.b16 %v121
    %v804 = vunpack.c.l.b16 %v122
    %v805 = vunpack.c.h.b16 %v122
    %v806 = vunpack.c.l.b16 %v123
    %v807 = vunpack.c.h.b16 %v123
    %v808 = vunpack.c.l.b16 %v124
    %v809 = vunpack.c.h.b16 %v124
    %v810 = vunpack.c.l.b16 %v125
    %v811 = vunpack.c.h.b16 %v125
    %v812 = vunpack.c.l.b16 %v126
    %v813 = vunpack.c.h.b16 %v126
    %v814 = vunpack.c.l.b16 %v127
    %v815 = vunpack.c.h.b16 %v127
    %v816 = vunpack.c.l.b16 %v128
    %v817 = vunpack.c.h.b16 %v128
    %v818 = vunpack.c.l.b16 %v129
    %v819 = vunpack.c.h.b16 %v129
    %v820 = vunpack.c.l.b16 %v130
    %v821 = vunpack.c.h.b16 %v130
    %v822 = vunpack.c.l.b16 %v131
    %v823 = vunpack.c.h.b16 %v131
    %v824 = vunpack.c.l.b16 %v132
    %v825 = vunpack.c.h.b16 %v132
    %v826 = vunpack.c.l.b16 %v133
    %v827 = vunpack.c.h.b16 %v133
    %v828 = vunpack.c.l.b16 %v134
    %v829 = vunpack.c.h.b16 %v134
    %v830 = vunpack.c.l.b16 %v135
    %v831 = vunpack.c.h.b16 %v135
    %v832 = vunpack.c.l.b16 %v136
    %v833 = vunpack.c.h.b16 %v136
    %v834 = vunpack.c.l.b16 %v137
    %v835 = vunpack.c.h.b16 %v137
    %v836 = vunpack.c.l.b16 %v138
    %v837 = vunpack.c.h.b16 %v138
    %v838 = vunpack.c.l.b16 %v139
    %v839 = vunpack.c.h.b16 %v139
    %v840 = vunpack.c.l.b16 %v140
    %v841 = vunpack.c.h.b16 %v140
    %v842 = vunpack.c.l.b16 %v141
    %v843 = vunpack.c.h.b16 %v141
    %v844 = vunpack.c.l.b16 %v142
    %v845 = vunpack.c.h.b16 %v142
    %v846 = vunpack.c.l.b16 %v143
    %v847 = vunpack.c.h.b16 %v143
    %v848 = vunpack.c.l.b16 %v144
    %v849 = vunpack.c.h.b16 %v144
    %v850 = vunpack.c.l.b16 %v145
    %v851 = vunpack.c.h.b16 %v145
    %v852 = vunpack.c.l.b16 %v146
    %v853 = vunpack.c.h.b16 %v146
    %v854 = vunpack.c.l.b16 %v147
    %v855 = vunpack.c.h.b16 %v147
    %v856 = vunpack.c.l.b16 %v148
    %v857 = vunpack.c.h.b16 %v148
    %v858 = vunpack.c.l.b16 %v149
    %v859 = vunpack.c.h.b16 %v149
    %v860 = vunpack.c.l.b16 %v150
    %v861 = vunpack.c.h.b16 %v150
    %v862 = vunpack.c.l.b16 %v151
    %v863 = vunpack.c.h.b16 %v151
    %v864 = vunpack.c.l.b16 %v152
    %v865 = vunpack.c.h.b16 %v152
    %v866 = vunpack.c.l.b16 %v153
    %v867 = vunpack.c.h.b16 %v153
    %v868 = vunpack.c.l.b16 %v154
    %v869 = vunpack.c.h.b16 %v154
    %v870 = vunpack.c.l.b16 %v155
    %v871 = vunpack.c.h.b16 %v155
    %v872 = vunpack.c.l.b16 %v156
    %v873 = vunpack.c.h.b16 %v156
    %v874 = vunpack.c.l.b16 %v157
    %v875 = vunpack.c.h.b16 %v157
    %v876 = vunpack.c.l.b16 %v158
    %v877 = vunpack.c.h.b16 %v158
    %v878 = vunpack.c.l.b16 %v159
    %v879 = vunpack.c.h.b16 %v159
    %v880 = vunpack.c.l.b16 %v160
    %v881 = vunpack.c.h.b16 %v160
    %v882 = vunpack.c.l.b16 %v161
    %v883 = vunpack.c.h.b16 %v161
    %v884 = vunpack.c.l.b16 %v162
    %v885 = vunpack.c.h.b16 %v162
    %v886 = vunpack.c.l.b16 %v163
    %v887 = vunpack.c.h.b16 %v163
    %v888 = vunpack.c.l.b16 %v164
    %v889 = vunpack.c.h.b16 %v164
    %v890 = vunpack.c.l.b16 %v165
    %v891 = vunpack.c.h.b16 %v165
    %v892 = vunpack.c.l.b16 %v166
    %v893 = vunpack.c.h.b16 %v166
    %v894 = vunpack.c.l.b16 %v167
    %v895 = vunpack.c.h.b16 %v167
    %v896 = vunpack.c.l.b16 %v168
    %v897 = vunpack.c.h.b16 %v168
    %v898 = vunpack.c.l.b16 %v169
    %v899 = vunpack.c.h.b16 %v169
    %v900 = vunpack.c.l.b16 %v170
    %v901 = vunpack.c.h.b16 %v170
    %v902 = vunpack.c.l.b16 %v171
    %v903 = vunpack.c.h.b16 %v171
    %v904 = vunpack.c.l.b16 %v172
    %v905 = vunpack.c.h.b16 %v172
    %v906 = vunpack.c.l.b16 %v173
    %v907 = vunpack.c.h.b16 %v173
    %v908 = vunpack.c.l.b16 %v174
    %v909 = vunpack.c.h.b16 %v174
    %v910 = vunpack.c.l.b16 %v175
    %v911 = vunpack.c.h.b16 %v175
    %v912 = vunpack.c.l.b16 %v176
    %v913 = vunpack.c.h.b16 %v176
    %v914 = vunpack.c.l.b16 %v177
    %v915 = vunpack.c.h.b16 %v177
    %v916 = vunpack.c.l.b16 %v178
    %v917 = vunpack.c.h.b16 %v178
    %v918 = vunpack.c.l.b16 %v179
    %v919 = vunpack.c.h.b16 %v179
    %v920 = vunpack.c.l.b16 %v180
    %v921 = vunpack.c.h.b16 %v180
    %v922 = vunpack.c.l.b16 %v181
    %v923 = vunpack.c.h.b16 %v181
    %v924 = vunpack.c.l.b16 %v182
    %v925 = vunpack.c.h.b16 %v182
    %v926 = vunpack.c.l.b16 %v183
    %v927 = vunpack.c.h.b16 %v183
    %v928 = vunpack.c.l.b16 %v184
    %v929 = vunpack.c.h.b16 %v184
    %v930 = vunpack.c.l.b16 %v185
    %v931 = vunpack.c.h.b16 %v185
    %v932 = vunpack.c.l.b16 %v186
    %v933 = vunpack.c.h.b16 %v186
    %v934 = vunpack.c.l.b16 %v187
    %v935 = vunpack.c.h.b16 %v187
    %v936 = vunpack.c.l.b16 %v188
    %v937 = vunpack.c.h.b16 %v188
    %v938 = vunpack.c.l.b16 %v189
    %v939 = vunpack.c.h.b16 %v189
    %v940 = vunpack.c.l.b16 %v190
    %v941 = vunpack.c.h.b16 %v190
    %v942 = vunpack.c.l.b16 %v191
    %v943 = vunpack.c.h.b16 %v191
    %v944 = vunpack.c.l.b16 %v192
    %v945 = vunpack.c.h.b16 %v192
    %v946 = vunpack.c.l.b16 %v193
    %v947 = vunpack.c.h.b16 %v193
    %v948 = vunpack.c.l.b16 %v194
    %v949 = vunpack.c.h.b16 %v194
    %v950 = vunpack.c.l.b16 %v195
    %v951 = vunpack.c.h.b16 %v195
    %v952 = vunpack.c.l.b16 %v196
    %v953 = vunpack.c.h.b16 %v196
    %v954 = vunpack.c.l.b16 %v197
    %v955 = vunpack.c.h.b16 %v197
    %v956 = vunpack.c.l.b16 %v198
    %v957 = vunpack.c.h.b16 %v198
    %v958 = vunpack.c.l.b16 %v199
    %v959 = vunpack.c.h.b16 %v199
    %v960 = vunpack.c.l.b16 %v200
    %v961 = vunpack.c.h.b16 %v200
    %v962 = vunpack.c.l.b16 %v201
    %v963 = vunpack.c.h.b16 %v201
    %v964 = vunpack.c.l.b16 %v202
    %v965 = vunpack.c.h.b16 %v202
    %v966 = vunpack.c.l.b16 %v203
    %v967 = vunpack.c.h.b16 %v203
    %v968 = vunpack.c.l.b16 %v204
    %v969 = vunpack.c.h.b16 %v204
    %v970 = vunpack.c.l.b16 %v205
    %v971 = vunpack.c.h.b16 %v205
    %v972 = vunpack.c.l.b16 %v206
    %v973 = vunpack.c.h.b16 %v206
    %v974 = vunpack.c.l.b16 %v207
    %v975 = vunpack.c.h.b16 %v207
    %v976 = vunpack.c.l.b16 %v208
    %v977 = vunpack.c.h.b16 %v208
    %v978 = vunpack.c.l.b16 %v209
    %v979 = vunpack.c.h.b16 %v209
    %v980 = vunpack.c.l.b16 %v210
    %v981 = vunpack.c.h.b16 %v210
    %v982 = vunpack.c.l.b16 %v211
    %v983 = vunpack.c.h.b16 %v211
    %v984 = vunpack.c.l.b16 %v212
    %v985 = vunpack.c.h.b16 %v212
    %v986 = vunpack.c.l.b16 %v213
    %v987 = vunpack.c.h.b16 %v213
    %v988 = vunpack.c.l.b16 %v214
    %v989 = vunpack.c.h.b16 %v214
    %v990 = vunpack.c.l.b16 %v215
    %v991 = vunpack.c.h.b16 %v215
    %v992 = vunpack.c.l.b16 %v216
    %v993 = vunpack.c.h.b16 %v216
    %v994 = vunpack.c.l.b16 %v217
    %v995 = vunpack.c.h.b16 %v217
    %v996 = vunpack.c.l.b16 %v218
    %v997 = vunpack.c.h.b16 %v218
    %v998 = vunpack.c.l.b16 %v219
    %v999 = vunpack.c.h.b16 %v219
    %v1000 = vunpack.c.l.b16 %v220
    %v1001 = vunpack.c.h.b16 %v220
    %v1002 = vunpack.c.l.b16 %v221
    %v1003 = vunpack.c.h.b16 %v221
    %v1004 = vunpack.c.l.b16 %v222
    %v1005 = vunpack.c.h.b16 %v222
    %v1006 = vunpack.c.l.b16 %v223
    %v1007 = vunpack.c.h.b16 %v223
    %v1008 = vunpack.c.l.b16 %v224
    %v1009 = vunpack.c.h.b16 %v224
    %v1010 = vunpack.c.l.b16 %v225
    %v1011 = vunpack.c.h.b16 %v225
    %v1012 = vunpack.c.l.b16 %v226
    %v1013 = vunpack.c.h.b16 %v226
    %v1014 = vunpack.c.l.b16 %v227
    %v1015 = vunpack.c.h.b16 %v227
    %v1016 = vunpack.c.l.b16 %v228
    %v1017 = vunpack.c.h.b16 %v228
    %v1018 = vunpack.c.l.b16 %v229
    %v1019 = vunpack.c.h.b16 %v229
    %v1020 = vunpack.c.l.b16 %v230
    %v1021 = vunpack.c.h.b16 %v230
    %v1022 = vunpack.c.l.b16 %v231
    %v1023 = vunpack.c.h.b16 %v231
    %v1024 = vunpack.c.l.b16 %v232
    %v1025 = vunpack.c.h.b16 %v232
    %v1026 = vunpack.c.l.b16 %v233
    %v1027 = vunpack.c.h.b16 %v233
    %v1028 = vunpack.c.l.b16 %v234
    %v1029 = vunpack.c.h.b16 %v234
    %v1030 = vunpack.c.l.b16 %v235
    %v1031 = vunpack.c.h.b16 %v235
    %v1032 = vunpack.c.l.b16 %v236
    %v1033 = vunpack.c.h.b16 %v236
    %v1034 = vunpack.c.l.b16 %v237
    %v1035 = vunpack.c.h.b16 %v237
    %v1036 = vunpack.c.l.b16 %v238
    %v1037 = vunpack.c.h.b16 %v238
    %v1038 = vunpack.c.l.b16 %v239
    %v1039 = vunpack.c.h.b16 %v239
    %v1040 = vunpack.c.l.b16 %v240
    %v1041 = vunpack.c.h.b16 %v240
    %v1042 = vunpack.c.l.b16 %v241
    %v1043 = vunpack.c.h.b16 %v241
    %v1044 = vunpack.c.l.b16 %v242
    %v1045 = vunpack.c.h.b16 %v242
    %v1046 = vunpack.c.l.b16 %v243
    %v1047 = vunpack.c.h.b16 %v243
    %v1048 = vunpack.c.l.b16 %v244
    %v1049 = vunpack.c.h.b16 %v244
    %v1050 = vunpack.c.l.b16 %v245
    %v1051 = vunpack.c.h.b16 %v245
    %v1052 = vunpack.c.l.b16 %v246
    %v1053 = vunpack.c.h.b16 %v246
    %v1054 = vunpack.c.l.b16 %v247
    %v1055 = vunpack.c.h.b16 %v247
    %v1056 = vunpack.c.l.b16 %v248
    %v1057 = vunpack.c.h.b16 %v248
    %v1058 = vunpack.c.l.b16 %v249
    %v1059 = vunpack.c.h.b16 %v249
    %v1060 = vunpack.c.l.b16 %v250
    %v1061 = vunpack.c.h.b16 %v250
    %v1062 = vunpack.c.l.b16 %v251
    %v1063 = vunpack.c.h.b16 %v251
    %v1064 = vunpack.c.l.b16 %v252
    %v1065 = vunpack.c.h.b16 %v252
    %v1066 = vunpack.c.l.b16 %v253
    %v1067 = vunpack.c.h.b16 %v253
    %v1068 = vunpack.c.l.b16 %v254
    %v1069 = vunpack.c.h.b16 %v254
    %v1070 = vunpack.c.l.b16 %v255
    %v1071 = vunpack.c.h.b16 %v255
    %v1072 = vunpack.c.l.b16 %v256
    %v1073 = vunpack.c.h.b16 %v256
    %v1074 = vunpack.c.l.b16 %v257
    %v1075 = vunpack.c.h.b16 %v257
    %v1076 = vunpack.c.l.b16 %v258
    %v1077 = vunpack.c.h.b16 %v258
    %v1078 = vunpack.c.l.b16 %v259
    %v1079 = vunpack.c.h.b16 %v259
    %v1080 = vunpack.c.l.b16 %v260
    %v1081 = vunpack.c.h.b16 %v260
    %v1082 = vunpack.c.l.b16 %v261
    %v1083 = vunpack.c.h.b16 %v261
    %v1084 = vunpack.c.l.b16 %v262
    %v1085 = vunpack.c.h.b16 %v262
    %v1086 = vunpack.c.l.b16 %v263
    %v1087 = vunpack.c.h.b16 %v263
    %v1088 = vunpack.c.l.b16 %v264
    %v1089 = vunpack.c.h.b16 %v264
    %v1090 = vunpack.c.l.b16 %v265
    %v1091 = vunpack.c.h.b16 %v265
    %v1092 = vunpack.c.l.b16 %v266
    %v1093 = vunpack.c.h.b16 %v266
    %v1094 = vunpack.c.l.b16 %v267
    %v1095 = vunpack.c.h.b16 %v267
    %v1096 = vunpack.c.l.b16 %v268
    %v1097 = vunpack.c.h.b16 %v268
    %v1098 = vunpack.c.l.b16 %v269
    %v1099 = vunpack.c.h.b16 %v269
    %v1100 = vunpack.c.l.b16 %v270
    %v1101 = vunpack.c.h.b16 %v270
    %v1102 = vunpack.c.l.b16 %v271
    %v1103 = vunpack.c.h.b16 %v271
    %v1104 = vunpack.c.l.b16 %v272
    %v1105 = vunpack.c.h.b16 %v272
    %v1106 = vunpack.c.l.b16 %v273
    %v1107 = vunpack.c.h.b16 %v273
    %v1108 = vunpack.c.l.b16 %v274
    %v1109 = vunpack.c.h.b16 %v274
    %v1110 = vunpack.c.l.b16 %v275
    %v1111 = vunpack.c.h.b16 %v275
    %v1112 = vunpack.c.l.b16 %v276
    %v1113 = vunpack.c.h.b16 %v276
    %v1114 = vunpack.c.l.b16 %v277
    %v1115 = vunpack.c.h.b16 %v277
    %v1116 = vunpack.c.l.b16 %v278
    %v1117 = vunpack.c.h.b16 %v278
    %v1118 = vunpack.c.l.b16 %v279
    %v1119 = vunpack.c.h.b16 %v279
    %v1120 = vunpack.c.l.b16 %v280
    %v1121 = vunpack.c.h.b16 %v280
    %v1122 = vunpack.c.l.b16 %v281
    %v1123 = vunpack.c.h.b16 %v281
    %v1124 = vunpack.c.l.b16 %v282
    %v1125 = vunpack.c.h.b16 %v282
    %v1126 = vunpack.c.l.b16 %v283
    %v1127 = vunpack.c.h.b16 %v283
    %v1128 = vunpack.c.l.b16 %v284
    %v1129 = vunpack.c.h.b16 %v284
    %v1130 = vunpack.c.l.b16 %v285
    %v1131 = vunpack.c.h.b16 %v285
    %v1132 = vunpack.c.l.b16 %v286
    %v1133 = vunpack.c.h.b16 %v286
    %v1134 = vunpack.c.l.b16 %v287
    %v1135 = vunpack.c.h.b16 %v287
    %v1136 = vunpack.c.l.b16 %v288
    %v1137 = vunpack.c.h.b16 %v288
    %v1138 = vunpack.c.l.b16 %v289
    %v1139 = vunpack.c.h.b16 %v289
    %v1140 = vunpack.c.l.b16 %v290
    %v1141 = vunpack.c.h.b16 %v290
    %v1142 = vunpack.c.l.b16 %v291
    %v1143 = vunpack.c.h.b16 %v291
    %v1144 = vunpack.c.l.b16 %v292
    %v1145 = vunpack.c.h.b16 %v292
    %v1146 = vunpack.c.l.b16 %v293
    %v1147 = vunpack.c.h.b16 %v293
    %v1148 = vunpack.c.l.b16 %v294
    %v1149 = vunpack.c.h.b16 %v294
    %v1150 = vunpack.c.l.b16 %v295
    %v1151 = vunpack.c.h.b16 %v295
    %v1152 = vunpack.c.l.b16 %v296
    %v1153 = vunpack.c.h.b16 %v296
    %v1154 = vunpack.c.l.b16 %v297
    %v1155 = vunpack.c.h.b16 %v297
    %v1156 = vunpack.c.l.b16 %v298
    %v1157 = vunpack.c.h.b16 %v298
    %v1158 = vunpack.c.l.b16 %v299
    %v1159 = vunpack.c.h.b16 %v299
    %v1160 = vunpack.c.l.b16 %v300
    %v1161 = vunpack.c.h.b16 %v300
    %v1162 = vunpack.c.l.b16 %v301
    %v1163 = vunpack.c.h.b16 %v301
    %v1164 = vunpack.c.l.b16 %v302
    %v1165 = vunpack.c.h.b16 %v302
    %v1166 = vunpack.c.l.b16 %v303
    %v1167 = vunpack.c.h.b16 %v303
    %v1168 = vunpack.c.l.b16 %v304
    %v1169 = vunpack.c.h.b16 %v304
    %v1170 = vunpack.c.l.b16 %v305
    %v1171 = vunpack.c.h.b16 %v305
    %v1172 = vunpack.c.l.b16 %v306
    %v1173 = vunpack.c.h.b16 %v306
    %v1174 = vunpack.c.l.b16 %v307
    %v1175 = vunpack.c.h.b16 %v307
    %v1176 = vunpack.c.l.b16 %v308
    %v1177 = vunpack.c.h.b16 %v308
    %v1178 = vunpack.c.l.b16 %v309
    %v1179 = vunpack.c.h.b16 %v309
    %v1180 = vunpack.c.l.b16 %v310
    %v1181 = vunpack.c.h.b16 %v310
    %v1182 = vunpack.c.l.b16 %v311
    %v1183 = vunpack.c.h.b16 %v311
    %v1184 = vunpack.c.l.b16 %v312
    %v1185 = vunpack.c.h.b16 %v312
    %v1186 = vunpack.c.l.b16 %v313
    %v1187 = vunpack.c.h.b16 %v313
    %v1188 = vunpack.c.l.b16 %v314
    %v1189 = vunpack.c.h.b16 %v314
    %v1190 = vunpack.c.l.b16 %v315
    %v1191 = vunpack.c.h.b16 %v315
    %v1192 = vunpack.c.l.b16 %v316
    %v1193 = vunpack.c.h.b16 %v316
    %v1194 = vunpack.c.l.b16 %v317
    %v1195 = vunpack.c.h.b16 %v317
    %v1196 = vunpack.c.l.b16 %v318
    %v1197 = vunpack.c.h.b16 %v318
    %v1198 = vunpack.c.l.b16 %v319
    %v1199 = vunpack.c.h.b16 %v319
    %v1200 = vunpack.c.l.b16 %v320
    %v1201 = vunpack.c.h.b16 %v320
    %v1202 = vunpack.c.l.b16 %v321
    %v1203 = vunpack.c.h.b16 %v321
    %v1204 = vunpack.c.l.b16 %v322
    %v1205 = vunpack.c.h.b16 %v322
    %v1206 = vunpack.c.l.b16 %v323
    %v1207 = vunpack.c.h.b16 %v323
    %v1208 = vunpack.c.l.b16 %v324
    %v1209 = vunpack.c.h.b16 %v324
    %v1210 = vunpack.c.l.b16 %v325
    %v1211 = vunpack.c.h.b16 %v325
    %v1212 = vunpack.c.l.b16 %v326
    %v1213 = vunpack.c.h.b16 %v326
    %v1214 = vunpack.c.l.b16 %v327
    %v1215 = vunpack.c.h.b16 %v327
    %v1216 = vunpack.c.l.b16 %v328
    %v1217 = vunpack.c.h.b16 %v328
    %v1218 = vunpack.c.l.b16 %v329
    %v1219 = vunpack.c.h.b16 %v329
    %v1220 = vunpack.c.l.b16 %v330
    %v1221 = vunpack.c.h.b16 %v330
    %v1222 = vunpack.c.l.b16 %v331
    %v1223 = vunpack.c.h.b16 %v331
    %v1224 = vunpack.c.l.b16 %v332
    %v1225 = vunpack.c.h.b16 %v332
    %v1226 = vunpack.c.l.b16 %v333
    %v1227 = vunpack.c.h.b16 %v333
    %v1228 = vunpack.c.l.b16 %v334
    %v1229 = vunpack.c.h.b16 %v334
    %v1230 = vunpack.c.l.b16 %v335
    %v1231 = vunpack.c.h.b16 %v335
    %v1232 = vpack.c.b16 %v662, %v656
    %v1233 = vpack.c.b16 %v663, %v657
    %v1234 = vpack.c.b16 %v664, %v658
    %v1235 = vpack.c.b16 %v665, %v659
    %v1236 = vpack.c.b16 %v666, %v660
    %v1237 = vpack.c.b16 %v667, %v661
    %v1238 = vpack.c.b16 %v674, %v668
    %v1239 = vpack.c.b16 %v675, %v669
    %v1240 = vpack.c.b16 %v676, %v670
    %v1241 = vpack.c.b16 %v677, %v671
    %v1242 = vpack.c.b16 %v678, %v672
    %v1243 = vpack.c.b16 %v679, %v673
    %v1244 = vpack.c.b16 %v686, %v680
    %v1245 = vpack.c.b16 %v687, %v681
    %v1246 = vpack.c.b16 %v688, %v682
    %v1247 = vpack.c.b16 %v689, %v683
    %v1248 = vpack.c.b16 %v690, %v684
    %v1249 = vpack.c.b16 %v691, %v685
    %v1250 = vpack.c.b16 %v698, %v692
    %v1251 = vpack.c.b16 %v699, %v693
    %v1252 = vpack.c.b16 %v700, %v694
    %v1253 = vpack.c.b16 %v701, %v695
    %v1254 = vpack.c.b16 %v702, %v696
    %v1255 = vpack.c.b16 %v703, %v697
    %v1256 = vpack.c.b16 %v710, %v704
    %v1257 = vpack.c.b16 %v711, %v705
    %v1258 = vpack.c.b16 %v712, %v706
    %v1259 = vpack.c.b16 %v713, %v707
    %v1260 = vpack.c.b16 %v714, %v708
    %v1261 = vpack.c.b16 %v715, %v709
    %v1262 = vpack.c.b16 %v722, %v716
    %v1263 = vpack.c.b16 %v723, %v717
    %v1264 = vpack.c.b16 %v724, %v718
    %v1265 = vpack.c.b16 %v725, %v719
    %v1266 = vpack.c.b16 %v726, %v720
    %v1267 = vpack.c.b16 %v727, %v721
    %v1268 = vpack.c.b16 %v734, %v728
    %v1269 = vpack.c.b16 %v735, %v729
    %v1270 = vpack.c.b16 %v736, %v730
    %v1271 = vpack.c.b16 %v737, %v731
    %v1272 = vpack.c.b16 %v738, %v732
    %v1273 = vpack.c.b16 %v739, %v733
    %v1274 = vpack.c.b16 %v746, %v740
    %v1275 = vpack.c.b16 %v747, %v741
    %v1276 = vpack.c.b16 %v748, %v742
    %v1277 = vpack.c.b16 %v749, %v743
    %v1278 = vpack.c.b16 %v750, %v744
    %v1279 = vpack.c.b16 %v751, %v745
    %v1280 = vpack.c.b16 %v758, %v752
    %v1281 = vpack.c.b16 %v759, %v753
    %v1282 = vpack.c.b16 %v760, %v754
    %v1283 = vpack.c.b16 %v761, %v755
    %v1284 = vpack.c.b16 %v762, %v756
    %v1285 = vpack.c.b16 %v763, %v757
    %v1286 = vpack.c.b16 %v770, %v764
    %v1287 = vpack.c.b16 %v771, %v765
    %v1288 = vpack.c.b16 %v772, %v766
    %v1289 = vpack.c.b16 %v773, %v767
    %v1290 = vpack.c.b16 %v774, %v768
    %v1291 = vpack.c.b16 %v775, %v769
    %v1292 = vpack.c.b16 %v782, %v776
    %v1293 = vpack.c.b16 %v783, %v777
    %v1294 = vpack.c.b16 %v784, %v778
    %v1295 = vpack.c.b16 %v785, %v779
    %v1296 = vpack.c.b16 %v786, %v780
    %v1297 = vpack.c.b16 %v787, %v781
    %v1298 = vpack.c.b16 %v794, %v788
    %v1299 = vpack.c.b16 %v795, %v789
    %v1300 = vpack.c.b16 %v796, %v790
    %v1301 = vpack.c.b16 %v797, %v791
    %v1302 = vpack.c.b16 %v798, %v792
    %v1303 = vpack.c.b16 %v799, %v793
    %v1304 = vpack.c.b16 %v806, %v800
    %v1305 = vpack.c.b16 %v807, %v801
    %v1306 = vpack.c.b16 %v808, %v802
    %v1307 = vpack.c.b16 %v809, %v803
    %v1308 = vpack.c.b16 %v810, %v804
    %v1309 = vpack.c.b16 %v811, %v805
    %v1310 = vpack.c.b16 %v818, %v812
    %v1311 = vpack.c.b16 %v819, %v813
    %v1312 = vpack.c.b16 %v820, %v814
    %v1313 = vpack.c.b16 %v821, %v815
    %v1314 = vpack.c.b16 %v822, %v816
    %v1315 = vpack.c.b16 %v823, %v817
    %v1316 = vpack.c.b16 %v830, %v824
    %v1317 = vpack.c.b16 %v831, %v825
    %v1318 = vpack.c.b16 %v832, %v826
    %v1319 = vpack.c.b16 %v833, %v827
    %v1320 = vpack.c.b16 %v834, %v828
    %v1321 = vpack.c.b16 %v835, %v829
    %v1322 = vpack.c.b16 %v842, %v836
    %v1323 = vpack.c.b16 %v843, %v837
    %v1324 = vpack.c.b16 %v844, %v838
    %v1325 = vpack.c.b16 %v845, %v839
    %v1326 = vpack.c.b16 %v846, %v840
    %v1327 = vpack.c.b16 %v847, %v841
    %v1328 = vpack.c.b16 %v854, %v848
    %v1329 = vpack.c.b16 %v855, %v849
    %v1330 = vpack.c.b16 %v856, %v850
    %v1331 = vpack.c.b16 %v857, %v851
    %v1332 = vpack.c.b16 %v858, %v852
    %v1333 = vpack.c.b16 %v859, %v853
    %v1334 = vpack.c.b16 %v866, %v860
    %v1335 = vpack.c.b16 %v867, %v861
    %v1336 = vpack.c.b16 %v868, %v862
    %v1337 = vpack.c.b16 %v869, %v863
    %v1338 = vpack.c.b16 %v870, %v864
    %v1339 = vpack.c.b16 %v871, %v865
    %v1340 = vpack.c.b16 %v878, %v872
    %v1341 = vpack.c.b16 %v879, %v873
    %v1342 = vpack.c.b16 %v880, %v874
    %v1343 = vpack.c.b16 %v881, %v875
    %v1344 = vpack.c.b16 %v882, %v876
    %v1345 = vpack.c.b16 %v883, %v877
    %v1346 = vpack.c.b16 %v890, %v884
    %v1347 = vpack.c.b16 %v891, %v885
    %v1348 = vpack.c.b16 %v892, %v886
    %v1349 = vpack.c.b16 %v893, %v887
    %v1350 = vpack.c.b16 %v894, %v888
    %v1351 = vpack.c.b16 %v895, %v889
    %v1352 = vpack.c.b16 %v902, %v896
    %v1353 = vpack.c.b16 %v903, %v897
    %v1354 = vpack.c.b16 %v904, %v898
    %v1355 = vpack.c.b16 %v905, %v899
    %v1356 = vpack.c.b16 %v906, %v900
    %v1357 = vpack.c.b16 %v907, %v901
    %v1358 = vpack.c.b16 %v914, %v908
    %v1359 = vpack.c.b16 %v915, %v909
    %v1360 = vpack.c.b16 %v916, %v910
    %v1361 = vpack.c.b16 %v917, %v911
    %v1362 = vpack.c.b16 %v918, %v912
    %v1363 = vpack.c.b16 %v919, %v913
    %v1364 = vpack.c.b16 %v926, %v920
    %v1365 = vpack.c.b16 %v927, %v921
    %v1366 = vpack.c.b16 %v928, %v922
    %v1367 = vpack.c.b16 %v929, %v923
    %v1368 = vpack.c.b16 %v930, %v924
    %v1369 = vpack.c.b16 %v931, %v925
    %v1370 = vpack.c.b16 %v938, %v932
    %v1371 = vpack.c.b16 %v939, %v933
    %v1372 = vpack.c.b16 %v940, %v934
    %v1373 = vpack.c.b16 %v941, %v935
    %v1374 = vpack.c.b16 %v942, %v936
    %v1375 = vpack.c.b16 %v943, %v937
    %v1376 = vpack.c.b16 %v950, %v944
    %v1377 = vpack.c.b16 %v951, %v945
    %v1378 = vpack.c.b16 %v952, %v946
    %v1379 = vpack.c.b16 %v953, %v947
    %v1380 = vpack.c.b16 %v954, %v948
    %v1381 = vpack.c.b16 %v955, %v949
    %v1382 = vpack.c.b16 %v962, %v956
    %v1383 = vpack.c.b16 %v963, %v957
    %v1384 = vpack.c.b16 %v964, %v958
    %v1385 = vpack.c.b16 %v965, %v959
    %v1386 = vpack.c.b16 %v966, %v960
    %v1387 = vpack.c.b16 %v967, %v961
    %v1388 = vpack.c.b16 %v974, %v968
    %v1389 = vpack.c.b16 %v975, %v969
    %v1390 = vpack.c.b16 %v976, %v970
    %v1391 = vpack.c.b16 %v977, %v971
    %v1392 = vpack.c.b16 %v978, %v972
    %v1393 = vpack.c.b16 %v979, %v973
    %v1394 = vpack.c.b16 %v986, %v980
    %v1395 = vpack.c.b16 %v987, %v981
    %v1396 = vpack.c.b16 %v988, %v982
    %v1397 = vpack.c.b16 %v989, %v983
    %v1398 = vpack.c.b16 %v990, %v984
    %v1399 = vpack.c.b16 %v991, %v985
    %v1400 = vpack.c.b16 %v998, %v992
    %v1401 = vpack.c.b16 %v999, %v993
    %v1402 = vpack.c.b16 %v1000, %v994
    %v1403 = vpack.c.b16 %v1001, %v995
    %v1404 = vpack.c.b16 %v1002, %v996
    %v1405 = vpack.c.b16 %v1003, %v997
    %v1406 = vpack.c.b16 %v1010, %v1004
    %v1407 = vpack.c.b16 %v1011, %v1005
    %v1408 = vpack.c.b16 %v1012, %v1006
    %v1409 = vpack.c.b16 %v1013, %v1007
    %v1410 = vpack.c.b16 %v1014, %v1008
    %v1411 = vpack.c.b16 %v1015, %v1009
    %v1412 = vpack.c.b16 %v1022, %v1016
    %v1413 = vpack.c.b16 %v1023, %v1017
    %v1414 = vpack.c.b16 %v1024, %v1018
    %v1415 = vpack.c.b16 %v1025, %v1019
    %v1416 = vpack.c.b16 %v1026, %v1020
    %v1417 = vpack.c.b16 %v1027, %v1021
    %v1418 = vpack.c.b16 %v1034, %v1028
    %v1419 = vpack.c.b16 %v1035, %v1029
    %v1420 = vpack.c.b16 %v1036, %v1030
    %v1421 = vpack.c.b16 %v1037, %v1031
    %v1422 = vpack.c.b16 %v1038, %v1032
    %v1423 = vpack.c.b16 %v1039, %v1033
    %v1424 = vpack.c.b16 %v1046, %v1040
    %v1425 = vpack.c.b16 %v1047, %v1041
    %v1426 = vpack.c.b16 %v1048, %v1042
    %v1427 = vpack.c.b16 %v1049, %v1043
    %v1428 = vpack.c.b16 %v1050, %v1044
    %v1429 = vpack.c.b16 %v1051, %v1045
    %v1430 = vpack.c.b16 %v1058, %v1052
    %v1431 = vpack.c.b16 %v1059, %v1053
    %v1432 = vpack.c.b16 %v1060, %v1054
    %v1433 = vpack.c.b16 %v1061, %v1055
    %v1434 = vpack.c.b16 %v1062, %v1056
    %v1435 = vpack.c.b16 %v1063, %v1057
    %v1436 = vpack.c.b16 %v1070, %v1064
    %v1437 = vpack.c.b16 %v1071, %v1065
    %v1438 = vpack.c.b16 %v1072, %v1066
    %v1439 = vpack.c.b16 %v1073, %v1067
    %v1440 = vpack.c.b16 %v1074, %v1068
    %v1441 = vpack.c.b16 %v1075, %v1069
    %v1442 = vpack.c.b16 %v1082, %v1076
    %v1443 = vpack.c.b16 %v1083, %v1077
    %v1444 = vpack.c.b16 %v1084, %v1078
    %v1445 = vpack.c.b16 %v1085, %v1079
    %v1446 = vpack.c.b16 %v1086, %v1080
    %v1447 = vpack.c.b16 %v1087, %v1081
    %v1448 = vpack.c.b16 %v1094, %v1088
    %v1449 = vpack.c.b16 %v1095, %v1089
    %v1450 = vpack.c.b16 %v1096, %v1090
    %v1451 = vpack.c.b16 %v1097, %v1091
    %v1452 = vpack.c.b16 %v1098, %v1092
    %v1453 = vpack.c.b16 %v1099, %v1093
    %v1454 = vpack.c.b16 %v1106, %v1100
    %v1455 = vpack.c.b16 %v1107, %v1101
    %v1456 = vpack.c.b16 %v1108, %v1102
    %v1457 = vpack.c.b16 %v1109, %v1103
    %v1458 = vpack.c.b16 %v1110, %v1104
    %v1459 = vpack.c.b16 %v1111, %v1105
    %v1460 = vpack.c.b16 %v1118, %v1112
    %v1461 = vpack.c.b16 %v1119, %v1113
    %v1462 = vpack.c.b16 %v1120, %v1114
    %v1463 = vpack.c.b16 %v1121, %v1115
    %v1464 = vpack.c.b16 %v1122, %v1116
    %v1465 = vpack.c.b16 %v1123, %v1117
    %v1466 = vpack.c.b16 %v1130, %v1124
    %v1467 = vpack.c.b16 %v1131, %v1125
    %v1468 = vpack.c.b16 %v1132, %v1126
    %v1469 = vpack.c.b16 %v1133, %v1127
    %v1470 = vpack.c.b16 %v1134, %v1128
    %v1471 = vpack.c.b16 %v1135, %v1129
    %v1472 = vpack.c.b16 %v1142, %v1136
    %v1473 = vpack.c.b16 %v1143, %v1137
    %v1474 = vpack.c.b16 %v1144, %v1138
    %v1475 = vpack.c.b16 %v1145, %v1139
    %v1476 = vpack.c.b16 %v1146, %v1140
    %v1477 = vpack.c.b16 %v1147, %v1141
    %v1478 = vpack.c.b16 %v1154, %v1148
    %v1479 = vpack.c.b16 %v1155, %v1149
    %v1480 = vpack.c.b16 %v1156, %v1150
    %v1481 = vpack.c.b16 %v1157, %v1151
    %v1482 = vpack.c.b16 %v1158, %v1152
    %v1483 = vpack.c.b16 %v1159, %v1153
    %v1484 = vpack.c.b16 %v1166, %v1160
    %v1485 = vpack.c.b16 %v1167, %v1161
    %v1486 = vpack.c.b16 %v1168, %v1162
    %v1487 = vpack.c.b16 %v1169, %v1163
    %v1488 = vpack.c.b16 %v1170, %v1164
    %v1489 = vpack.c.b16 %v1171, %v1165
    %v1490 = vpack.c.b16 %v1178, %v1172
    %v1491 = vpack.c.b16 %v1179, %v1173
    %v1492 = vpack.c.b16 %v1180, %v1174
    %v1493 = vpack.c.b16 %v1181, %v1175
    %v1494 = vpack.c.b16 %v1182, %v1176
    %v1495 = vpack.c.b16 %v1183, %v1177
    %v1496 = vpack.c.b16 %v1190, %v1184
    %v1497 = vpack.c.b16 %v1191, %v1185
    %v1498 = vpack.c.b16 %v1192, %v1186
    %v1499 = vpack.c.b16 %v1193, %v1187
    %v1500 = vpack.c.b16 %v1194, %v1188
    %v1501 = vpack.c.b16 %v1195, %v1189
    %v1502 = vpack.c.b16 %v1202, %v1196
    %v1503 = vpack.c.b16 %v1203, %v1197
    %v1504 = vpack.c.b16 %v1204, %v1198
    %v1505 = vpack.c.b16 %v1205, %v1199
    %v1506 = vpack.c.b16 %v1206, %v1200
    %v1507 = vpack.c.b16 %v1207, %v1201
    %v1508 = vpack.c.b16 %v1214, %v1208
    %v1509 = vpack.c.b16 %v1215, %v1209
    %v1510 = vpack.c.b16 %v1216, %v1210
    %v1511 = vpack.c.b16 %v1217, %v1211
    %v1512 = vpack.c.b16 %v1218, %v1212
    %v1513 = vpack.c.b16 %v1219, %v1213
    %v1514 = vpack.c.b16 %v1226, %v1220
    %v1515 = vpack.c.b16 %v1227, %v1221
    %v1516 = vpack.c.b16 %v1228, %v1222
    %v1517 = vpack.c.b16 %v1229, %v1223
    %v1518 = vpack.c.b16 %v1230, %v1224
    %v1519 = vpack.c.b16 %v1231, %v1225
    %1808 = vmatprep.subr.bf16.mxu0 %v1233
    %1809 = vmatpush1.bf16.msra.mxu0 %v1232
    %1810 = vmatprep.subr.bf16.mxu0 %v1239
    %1811 = vmatpush1.bf16.msra.mxu0 %v1238
    %1812 = vmatprep.subr.bf16.mxu0 %v1245
    %1813 = vmatpush1.bf16.msra.mxu0 %v1244
    %1814 = vmatprep.subr.bf16.mxu0 %v1251
    %1815 = vmatpush1.bf16.msra.mxu0 %v1250
    %1816 = vmatprep.subr.bf16.mxu0 %v1257
    %1817 = vmatpush1.bf16.msra.mxu0 %v1256
    %1818 = vmatprep.subr.bf16.mxu0 %v1263
    %1819 = vmatpush1.bf16.msra.mxu0 %v1262
    %1820 = vmatprep.subr.bf16.mxu0 %v1269
    %1821 = vmatpush1.bf16.msra.mxu0 %v1268
    %1822 = vmatprep.subr.bf16.mxu0 %v1275
    %1823 = vmatpush1.bf16.msra.mxu0 %v1274
    %1824 = vmatprep.subr.bf16.mxu0 %v1281
    %1825 = vmatpush1.bf16.msra.mxu0 %v1280
    %1826 = vmatprep.subr.bf16.mxu0 %v1287
    %1827 = vmatpush1.bf16.msra.mxu0 %v1286
    %1828 = vmatprep.subr.bf16.mxu0 %v1293
    %1829 = vmatpush1.bf16.msra.mxu0 %v1292
    %1830 = vmatprep.subr.bf16.mxu0 %v1299
    %1831 = vmatpush1.bf16.msra.mxu0 %v1298
    %1832 = vmatprep.subr.bf16.mxu0 %v1305
    %1833 = vmatpush1.bf16.msra.mxu0 %v1304
    %1834 = vmatprep.subr.bf16.mxu0 %v1311
    %1835 = vmatpush1.bf16.msra.mxu0 %v1310
    %1836 = vmatprep.subr.bf16.mxu0 %v1317
    %1837 = vmatpush1.bf16.msra.mxu0 %v1316
    %1838 = vmatprep.subr.bf16.mxu0 %v1323
    %1839 = vmatpush1.bf16.msra.mxu0 %v1322
    %1840 = vmatprep.mubr.bf16.mxu0 %v43
    %1841 = vmatmul.mubr.bf16.gmra.mrb[0].mxu0 %v42
    %v1842 = vpop.f32.mrb[0].mxu0
    %v1843 = vadd.f32 %v341, %v1842
    %v1844 = vpop.f32.mrb[0].mxu0
    %v1845 = vadd.f32 %v345, %v1844
    %v1846 = vpop.f32.mrb[0].mxu0
    %v1847 = vadd.f32 %v341, %v1846
    %v1848 = vpop.f32.mrb[0].mxu0
    %v1849 = vadd.f32 %v345, %v1848
    %1850 = vdwg.mxu0
    %1851 = vmatprep.subr.bf16.mxu0 %v1329
    %1852 = vmatpush1.bf16.msra.mxu0 %v1328
    %1853 = vmatprep.subr.bf16.mxu0 %v1335
    %1854 = vmatpush1.bf16.msra.mxu0 %v1334
    %1855 = vmatprep.subr.bf16.mxu0 %v1341
    %1856 = vmatpush1.bf16.msra.mxu0 %v1340
    %1857 = vmatprep.subr.bf16.mxu0 %v1347
    %1858 = vmatpush1.bf16.msra.mxu0 %v1346
    %1859 = vmatprep.subr.bf16.mxu0 %v1353
    %1860 = vmatpush1.bf16.msra.mxu0 %v1352
    %1861 = vmatprep.subr.bf16.mxu0 %v1359
    %1862 = vmatpush1.bf16.msra.mxu0 %v1358
    %1863 = vmatprep.subr.bf16.mxu0 %v1365
    %1864 = vmatpush1.bf16.msra.mxu0 %v1364
    %1865 = vmatprep.subr.bf16.mxu0 %v1371
    %1866 = vmatpush1.bf16.msra.mxu0 %v1370
    %1867 = vmatprep.subr.bf16.mxu0 %v1377
    %1868 = vmatpush1.bf16.msra.mxu0 %v1376
    %1869 = vmatprep.subr.bf16.mxu0 %v1383
    %1870 = vmatpush1.bf16.msra.mxu0 %v1382
    %1871 = vmatprep.subr.bf16.mxu0 %v1389
    %1872 = vmatpush1.bf16.msra.mxu0 %v1388
    %1873 = vmatprep.subr.bf16.mxu0 %v1395
    %1874 = vmatpush1.bf16.msra.mxu0 %v1394
    %1875 = vmatprep.subr.bf16.mxu0 %v1401
    %1876 = vmatpush1.bf16.msra.mxu0 %v1400
    %1877 = vmatprep.subr.bf16.mxu0 %v1407
    %1878 = vmatpush1.bf16.msra.mxu0 %v1406
    %1879 = vmatprep.subr.bf16.mxu0 %v1413
    %1880 = vmatpush1.bf16.msra.mxu0 %v1412
    %1881 = vmatprep.subr.bf16.mxu0 %v1419
    %1882 = vmatpush1.bf16.msra.mxu0 %v1418
    %1883 = vmatprep.mubr.bf16.mxu0 %v45
    %1884 = vmatmul.mubr.bf16.gmra.mrb[0].mxu0 %v44
    %v1885 = vpop.f32.mrb[0].mxu0
    %v1886 = vadd.f32 %v1843, %v1885
    %v1887 = vpop.f32.mrb[0].mxu0
    %v1888 = vadd.f32 %v1845, %v1887
    %v1889 = vpop.f32.mrb[0].mxu0
    %v1890 = vadd.f32 %v1847, %v1889
    %v1891 = vpop.f32.mrb[0].mxu0
    %v1892 = vadd.f32 %v1849, %v1891
    %1893 = vdwg.mxu0
    %1894 = vmatprep.subr.bf16.mxu0 %v1425
    %1895 = vmatpush1.bf16.msra.mxu0 %v1424
    %1896 = vmatprep.subr.bf16.mxu0 %v1431
    %1897 = vmatpush1.bf16.msra.mxu0 %v1430
    %1898 = vmatprep.subr.bf16.mxu0 %v1437
    %1899 = vmatpush1.bf16.msra.mxu0 %v1436
    %1900 = vmatprep.subr.bf16.mxu0 %v1443
    %1901 = vmatpush1.bf16.msra.mxu0 %v1442
    %1902 = vmatprep.subr.bf16.mxu0 %v1449
    %1903 = vmatpush1.bf16.msra.mxu0 %v1448
    %1904 = vmatprep.subr.bf16.mxu0 %v1455
    %1905 = vmatpush1.bf16.msra.mxu0 %v1454
    %1906 = vmatprep.subr.bf16.mxu0 %v1461
    %1907 = vmatpush1.bf16.msra.mxu0 %v1460
    %1908 = vmatprep.subr.bf16.mxu0 %v1467
    %1909 = vmatpush1.bf16.msra.mxu0 %v1466
    %1910 = vmatprep.subr.bf16.mxu0 %v1473
    %1911 = vmatpush1.bf16.msra.mxu0 %v1472
    %1912 = vmatprep.subr.bf16.mxu0 %v1479
    %1913 = vmatpush1.bf16.msra.mxu0 %v1478
    %1914 = vmatprep.subr.bf16.mxu0 %v1485
    %1915 = vmatpush1.bf16.msra.mxu0 %v1484
    %1916 = vmatprep.subr.bf16.mxu0 %v1491
    %1917 = vmatpush1.bf16.msra.mxu0 %v1490
    %1918 = vmatprep.subr.bf16.mxu0 %v1497
    %1919 = vmatpush1.bf16.msra.mxu0 %v1496
    %1920 = vmatprep.subr.bf16.mxu0 %v1503
    %1921 = vmatpush1.bf16.msra.mxu0 %v1502
    %1922 = vmatprep.subr.bf16.mxu0 %v1509
    %1923 = vmatpush1.bf16.msra.mxu0 %v1508
    %1924 = vmatprep.subr.bf16.mxu0 %v1515
    %1925 = vmatpush1.bf16.msra.mxu0 %v1514
    %1926 = vmatprep.mubr.bf16.mxu0 %v47
    %1927 = vmatmul.mubr.bf16.gmra.mrb[0].mxu0 %v46
    %v1928 = vpop.f32.mrb[0].mxu0
    %v1929 = vadd.f32 %v1886, %v1928
    %v1930 = vpop.f32.mrb[0].mxu0
    %v1931 = vadd.f32 %v1888, %v1930
    %v1932 = vpop.f32.mrb[0].mxu0
    %v1933 = vadd.f32 %v1890, %v1932
    %v1934 = vpop.f32.mrb[0].mxu0
    %v1935 = vadd.f32 %v1892, %v1934
    %1936 = vdwg.mxu0
    %1937 = vmatprep.subr.bf16.mxu0 %v1235
    %1938 = vmatpush1.bf16.msra.mxu0 %v1234
    %1939 = vmatprep.subr.bf16.mxu0 %v1241
    %1940 = vmatpush1.bf16.msra.mxu0 %v1240
    %1941 = vmatprep.subr.bf16.mxu0 %v1247
    %1942 = vmatpush1.bf16.msra.mxu0 %v1246
    %1943 = vmatprep.subr.bf16.mxu0 %v1253
    %1944 = vmatpush1.bf16.msra.mxu0 %v1252
    %1945 = vmatprep.subr.bf16.mxu0 %v1259
    %1946 = vmatpush1.bf16.msra.mxu0 %v1258
    %1947 = vmatprep.subr.bf16.mxu0 %v1265
    %1948 = vmatpush1.bf16.msra.mxu0 %v1264
    %1949 = vmatprep.subr.bf16.mxu0 %v1271
    %1950 = vmatpush1.bf16.msra.mxu0 %v1270
    %1951 = vmatprep.subr.bf16.mxu0 %v1277
    %1952 = vmatpush1.bf16.msra.mxu0 %v1276
    %1953 = vmatprep.subr.bf16.mxu0 %v1283
    %1954 = vmatpush1.bf16.msra.mxu0 %v1282
    %1955 = vmatprep.subr.bf16.mxu0 %v1289
    %1956 = vmatpush1.bf16.msra.mxu0 %v1288
    %1957 = vmatprep.subr.bf16.mxu0 %v1295
    %1958 = vmatpush1.bf16.msra.mxu0 %v1294
    %1959 = vmatprep.subr.bf16.mxu0 %v1301
    %1960 = vmatpush1.bf16.msra.mxu0 %v1300
    %1961 = vmatprep.subr.bf16.mxu0 %v1307
    %1962 = vmatpush1.bf16.msra.mxu0 %v1306
    %1963 = vmatprep.subr.bf16.mxu0 %v1313
    %1964 = vmatpush1.bf16.msra.mxu0 %v1312
    %1965 = vmatprep.subr.bf16.mxu0 %v1319
    %1966 = vmatpush1.bf16.msra.mxu0 %v1318
    %1967 = vmatprep.subr.bf16.mxu0 %v1325
    %1968 = vmatpush1.bf16.msra.mxu0 %v1324
    %1969 = vmatprep.mubr.bf16.mxu0 %v43
    %1970 = vmatmul.mubr.bf16.gmra.mrb[0].mxu0 %v42
    %v1971 = vpop.f32.mrb[0].mxu0
    %v1972 = vadd.f32 %v349, %v1971
    %v1973 = vpop.f32.mrb[0].mxu0
    %v1974 = vadd.f32 %v353, %v1973
    %v1975 = vpop.f32.mrb[0].mxu0
    %v1976 = vadd.f32 %v349, %v1975
    %v1977 = vpop.f32.mrb[0].mxu0
    %v1978 = vadd.f32 %v353, %v1977
    %1979 = vdwg.mxu0
    %1980 = vmatprep.subr.bf16.mxu0 %v1331
    %1981 = vmatpush1.bf16.msra.mxu0 %v1330
    %1982 = vmatprep.subr.bf16.mxu0 %v1337
    %1983 = vmatpush1.bf16.msra.mxu0 %v1336
    %1984 = vmatprep.subr.bf16.mxu0 %v1343
    %1985 = vmatpush1.bf16.msra.mxu0 %v1342
    %1986 = vmatprep.subr.bf16.mxu0 %v1349
    %1987 = vmatpush1.bf16.msra.mxu0 %v1348
    %1988 = vmatprep.subr.bf16.mxu0 %v1355
    %1989 = vmatpush1.bf16.msra.mxu0 %v1354
    %1990 = vmatprep.subr.bf16.mxu0 %v1361
    %1991 = vmatpush1.bf16.msra.mxu0 %v1360
    %1992 = vmatprep.subr.bf16.mxu0 %v1367
    %1993 = vmatpush1.bf16.msra.mxu0 %v1366
    %1994 = vmatprep.subr.bf16.mxu0 %v1373
    %1995 = vmatpush1.bf16.msra.mxu0 %v1372
    %1996 = vmatprep.subr.bf16.mxu0 %v1379
    %1997 = vmatpush1.bf16.msra.mxu0 %v1378
    %1998 = vmatprep.subr.bf16.mxu0 %v1385
    %1999 = vmatpush1.bf16.msra.mxu0 %v1384
    %2000 = vmatprep.subr.bf16.mxu0 %v1391
    %2001 = vmatpush1.bf16.msra.mxu0 %v1390
    %2002 = vmatprep.subr.bf16.mxu0 %v1397
    %2003 = vmatpush1.bf16.msra.mxu0 %v1396
    %2004 = vmatprep.subr.bf16.mxu0 %v1403
    %2005 = vmatpush1.bf16.msra.mxu0 %v1402
    %2006 = vmatprep.subr.bf16.mxu0 %v1409
    %2007 = vmatpush1.bf16.msra.mxu0 %v1408
    %2008 = vmatprep.subr.bf16.mxu0 %v1415
    %2009 = vmatpush1.bf16.msra.mxu0 %v1414
    %2010 = vmatprep.subr.bf16.mxu0 %v1421
    %2011 = vmatpush1.bf16.msra.mxu0 %v1420
    %2012 = vmatprep.mubr.bf16.mxu0 %v45
    %2013 = vmatmul.mubr.bf16.gmra.mrb[0].mxu0 %v44
    %v2014 = vpop.f32.mrb[0].mxu0
    %v2015 = vadd.f32 %v1972, %v2014
    %v2016 = vpop.f32.mrb[0].mxu0
    %v2017 = vadd.f32 %v1974, %v2016
    %v2018 = vpop.f32.mrb[0].mxu0
    %v2019 = vadd.f32 %v1976, %v2018
    %v2020 = vpop.f32.mrb[0].mxu0
    %v2021 = vadd.f32 %v1978, %v2020
    %2022 = vdwg.mxu0
    %2023 = vmatprep.subr.bf16.mxu0 %v1427
    %2024 = vmatpush1.bf16.msra.mxu0 %v1426
    %2025 = vmatprep.subr.bf16.mxu0 %v1433
    %2026 = vmatpush1.bf16.msra.mxu0 %v1432
    %2027 = vmatprep.subr.bf16.mxu0 %v1439
    %2028 = vmatpush1.bf16.msra.mxu0 %v1438
    %2029 = vmatprep.subr.bf16.mxu0 %v1445
    %2030 = vmatpush1.bf16.msra.mxu0 %v1444
    %2031 = vmatprep.subr.bf16.mxu0 %v1451
    %2032 = vmatpush1.bf16.msra.mxu0 %v1450
    %2033 = vmatprep.subr.bf16.mxu0 %v1457
    %2034 = vmatpush1.bf16.msra.mxu0 %v1456
    %2035 = vmatprep.subr.bf16.mxu0 %v1463
    %2036 = vmatpush1.bf16.msra.mxu0 %v1462
    %2037 = vmatprep.subr.bf16.mxu0 %v1469
    %2038 = vmatpush1.bf16.msra.mxu0 %v1468
    %2039 = vmatprep.subr.bf16.mxu0 %v1475
    %2040 = vmatpush1.bf16.msra.mxu0 %v1474
    %2041 = vmatprep.subr.bf16.mxu0 %v1481
    %2042 = vmatpush1.bf16.msra.mxu0 %v1480
    %2043 = vmatprep.subr.bf16.mxu0 %v1487
    %2044 = vmatpush1.bf16.msra.mxu0 %v1486
    %2045 = vmatprep.subr.bf16.mxu0 %v1493
    %2046 = vmatpush1.bf16.msra.mxu0 %v1492
    %2047 = vmatprep.subr.bf16.mxu0 %v1499
    %2048 = vmatpush1.bf16.msra.mxu0 %v1498
    %2049 = vmatprep.subr.bf16.mxu0 %v1505
    %2050 = vmatpush1.bf16.msra.mxu0 %v1504
    %2051 = vmatprep.subr.bf16.mxu0 %v1511
    %2052 = vmatpush1.bf16.msra.mxu0 %v1510
    %2053 = vmatprep.subr.bf16.mxu0 %v1517
    %2054 = vmatpush1.bf16.msra.mxu0 %v1516
    %2055 = vmatprep.mubr.bf16.mxu0 %v47
    %2056 = vmatmul.mubr.bf16.gmra.mrb[0].mxu0 %v46
    %v2057 = vpop.f32.mrb[0].mxu0
    %v2058 = vadd.f32 %v2015, %v2057
    %v2059 = vpop.f32.mrb[0].mxu0
    %v2060 = vadd.f32 %v2017, %v2059
    %v2061 = vpop.f32.mrb[0].mxu0
    %v2062 = vadd.f32 %v2019, %v2061
    %v2063 = vpop.f32.mrb[0].mxu0
    %v2064 = vadd.f32 %v2021, %v2063
    %2065 = vdwg.mxu0
    %2066 = vmatprep.subr.bf16.mxu0 %v1237
    %2067 = vmatpush1.bf16.msra.mxu0 %v1236
    %2068 = vmatprep.subr.bf16.mxu0 %v1243
    %2069 = vmatpush1.bf16.msra.mxu0 %v1242
    %2070 = vmatprep.subr.bf16.mxu0 %v1249
    %2071 = vmatpush1.bf16.msra.mxu0 %v1248
    %2072 = vmatprep.subr.bf16.mxu0 %v1255
    %2073 = vmatpush1.bf16.msra.mxu0 %v1254
    %2074 = vmatprep.subr.bf16.mxu0 %v1261
    %2075 = vmatpush1.bf16.msra.mxu0 %v1260
    %2076 = vmatprep.subr.bf16.mxu0 %v1267
    %2077 = vmatpush1.bf16.msra.mxu0 %v1266
    %2078 = vmatprep.subr.bf16.mxu0 %v1273
    %2079 = vmatpush1.bf16.msra.mxu0 %v1272
    %2080 = vmatprep.subr.bf16.mxu0 %v1279
    %2081 = vmatpush1.bf16.msra.mxu0 %v1278
    %2082 = vmatprep.subr.bf16.mxu0 %v1285
    %2083 = vmatpush1.bf16.msra.mxu0 %v1284
    %2084 = vmatprep.subr.bf16.mxu0 %v1291
    %2085 = vmatpush1.bf16.msra.mxu0 %v1290
    %2086 = vmatprep.subr.bf16.mxu0 %v1297
    %2087 = vmatpush1.bf16.msra.mxu0 %v1296
    %2088 = vmatprep.subr.bf16.mxu0 %v1303
    %2089 = vmatpush1.bf16.msra.mxu0 %v1302
    %2090 = vmatprep.subr.bf16.mxu0 %v1309
    %2091 = vmatpush1.bf16.msra.mxu0 %v1308
    %2092 = vmatprep.subr.bf16.mxu0 %v1315
    %2093 = vmatpush1.bf16.msra.mxu0 %v1314
    %2094 = vmatprep.subr.bf16.mxu0 %v1321
    %2095 = vmatpush1.bf16.msra.mxu0 %v1320
    %2096 = vmatprep.subr.bf16.mxu0 %v1327
    %2097 = vmatpush1.bf16.msra.mxu0 %v1326
    %2098 = vmatprep.mubr.bf16.mxu0 %v43
    %2099 = vmatmul.mubr.bf16.gmra.mrb[0].mxu0 %v42
    %v2100 = vpop.f32.mrb[0].mxu0
    %v2101 = vadd.f32 %v357, %v2100
    %v2102 = vpop.f32.mrb[0].mxu0
    %v2103 = vadd.f32 %v361, %v2102
    %v2104 = vpop.f32.mrb[0].mxu0
    %v2105 = vadd.f32 %v357, %v2104
    %v2106 = vpop.f32.mrb[0].mxu0
    %v2107 = vadd.f32 %v361, %v2106
    %2108 = vdwg.mxu0
    %2109 = vmatprep.subr.bf16.mxu0 %v1333
    %2110 = vmatpush1.bf16.msra.mxu0 %v1332
    %2111 = vmatprep.subr.bf16.mxu0 %v1339
    %2112 = vmatpush1.bf16.msra.mxu0 %v1338
    %2113 = vmatprep.subr.bf16.mxu0 %v1345
    %2114 = vmatpush1.bf16.msra.mxu0 %v1344
    %2115 = vmatprep.subr.bf16.mxu0 %v1351
    %2116 = vmatpush1.bf16.msra.mxu0 %v1350
    %2117 = vmatprep.subr.bf16.mxu0 %v1357
    %2118 = vmatpush1.bf16.msra.mxu0 %v1356
    %2119 = vmatprep.subr.bf16.mxu0 %v1363
    %2120 = vmatpush1.bf16.msra.mxu0 %v1362
    %2121 = vmatprep.subr.bf16.mxu0 %v1369
    %2122 = vmatpush1.bf16.msra.mxu0 %v1368
    %2123 = vmatprep.subr.bf16.mxu0 %v1375
    %2124 = vmatpush1.bf16.msra.mxu0 %v1374
    %2125 = vmatprep.subr.bf16.mxu0 %v1381
    %2126 = vmatpush1.bf16.msra.mxu0 %v1380
    %2127 = vmatprep.subr.bf16.mxu0 %v1387
    %2128 = vmatpush1.bf16.msra.mxu0 %v1386
    %2129 = vmatprep.subr.bf16.mxu0 %v1393
    %2130 = vmatpush1.bf16.msra.mxu0 %v1392
    %2131 = vmatprep.subr.bf16.mxu0 %v1399
    %2132 = vmatpush1.bf16.msra.mxu0 %v1398
    %2133 = vmatprep.subr.bf16.mxu0 %v1405
    %2134 = vmatpush1.bf16.msra.mxu0 %v1404
    %2135 = vmatprep.subr.bf16.mxu0 %v1411
    %2136 = vmatpush1.bf16.msra.mxu0 %v1410
    %2137 = vmatprep.subr.bf16.mxu0 %v1417
    %2138 = vmatpush1.bf16.msra.mxu0 %v1416
    %2139 = vmatprep.subr.bf16.mxu0 %v1423
    %2140 = vmatpush1.bf16.msra.mxu0 %v1422
    %2141 = vmatprep.mubr.bf16.mxu0 %v45
    %2142 = vmatmul.mubr.bf16.gmra.mrb[0].mxu0 %v44
    %v2143 = vpop.f32.mrb[0].mxu0
    %v2144 = vadd.f32 %v2101, %v2143
    %v2145 = vpop.f32.mrb[0].mxu0
    %v2146 = vadd.f32 %v2103, %v2145
    %v2147 = vpop.f32.mrb[0].mxu0
    %v2148 = vadd.f32 %v2105, %v2147
    %v2149 = vpop.f32.mrb[0].mxu0
    %v2150 = vadd.f32 %v2107, %v2149
    %2151 = vdwg.mxu0
    %2152 = vmatprep.subr.bf16.mxu0 %v1429
    %2153 = vmatpush1.bf16.msra.mxu0 %v1428
    %2154 = vmatprep.subr.bf16.mxu0 %v1435
    %2155 = vmatpush1.bf16.msra.mxu0 %v1434
    %2156 = vmatprep.subr.bf16.mxu0 %v1441
    %2157 = vmatpush1.bf16.msra.mxu0 %v1440
    %2158 = vmatprep.subr.bf16.mxu0 %v1447
    %2159 = vmatpush1.bf16.msra.mxu0 %v1446
    %2160 = vmatprep.subr.bf16.mxu0 %v1453
    %2161 = vmatpush1.bf16.msra.mxu0 %v1452
    %2162 = vmatprep.subr.bf16.mxu0 %v1459
    %2163 = vmatpush1.bf16.msra.mxu0 %v1458
    %2164 = vmatprep.subr.bf16.mxu0 %v1465
    %2165 = vmatpush1.bf16.msra.mxu0 %v1464
    %2166 = vmatprep.subr.bf16.mxu0 %v1471
    %2167 = vmatpush1.bf16.msra.mxu0 %v1470
    %2168 = vmatprep.subr.bf16.mxu0 %v1477
    %2169 = vmatpush1.bf16.msra.mxu0 %v1476
    %2170 = vmatprep.subr.bf16.mxu0 %v1483
    %2171 = vmatpush1.bf16.msra.mxu0 %v1482
    %2172 = vmatprep.subr.bf16.mxu0 %v1489
    %2173 = vmatpush1.bf16.msra.mxu0 %v1488
    %2174 = vmatprep.subr.bf16.mxu0 %v1495
    %2175 = vmatpush1.bf16.msra.mxu0 %v1494
    %2176 = vmatprep.subr.bf16.mxu0 %v1501
    %2177 = vmatpush1.bf16.msra.mxu0 %v1500
    %2178 = vmatprep.subr.bf16.mxu0 %v1507
    %2179 = vmatpush1.bf16.msra.mxu0 %v1506
    %2180 = vmatprep.subr.bf16.mxu0 %v1513
    %2181 = vmatpush1.bf16.msra.mxu0 %v1512
    %2182 = vmatprep.subr.bf16.mxu0 %v1519
    %2183 = vmatpush1.bf16.msra.mxu0 %v1518
    %2184 = vmatprep.mubr.bf16.mxu0 %v47
    %2185 = vmatmul.mubr.bf16.gmra.mrb[0].mxu0 %v46
    %v2186 = vpop.f32.mrb[0].mxu0
    %v2187 = vadd.f32 %v2144, %v2186
    %v2188 = vpop.f32.mrb[0].mxu0
    %v2189 = vadd.f32 %v2146, %v2188
    %v2190 = vpop.f32.mrb[0].mxu0
    %v2191 = vadd.f32 %v2148, %v2190
    %v2192 = vpop.f32.mrb[0].mxu0
    %v2193 = vadd.f32 %v2150, %v2192
    %2194 = vdwg.mxu0
    %v2195 = vld [vmem:[%s3] sm:$0xf]
    %v2196 = vld [vmem:[%s3 + $0x4] sm:$0xf]
    %v2197 = vld [vmem:[%s3 + $0x8] sm:$0xf]
    %v2198 = vld [vmem:[%s3 + $0xc] sm:$0xf]
    %v2199 = vld [vmem:[%s3 + $0x10] sm:$0xf]
    %v2200 = vld [vmem:[%s3 + $0x14] sm:$0xf]
    %v2201 = vld [vmem:[%s3 + $0x18] sm:$0xf]
    %v2202 = vld [vmem:[%s3 + $0x1c] sm:$0xf]
    %v2203 = vld [vmem:[%s3 + $0x20] sm:$0xf]
    %v2204 = vld [vmem:[%s3 + $0x24] sm:$0xf]
    %v2205 = vld [vmem:[%s3 + $0x28] sm:$0xf]
    %v2206 = vld [vmem:[%s3 + $0x2c] sm:$0xf]
    %v2207 = vld [vmem:[%s3 + $0x30] sm:$0xf]
    %v2208 = vld [vmem:[%s3 + $0x34] sm:$0xf]
    %v2209 = vld [vmem:[%s3 + $0x38] sm:$0xf]
    %v2210 = vld [vmem:[%s3 + $0x3c] sm:$0xf]
    %v2211 = vld [vmem:[%s3 + $0x40] sm:$0xf]
    %v2212 = vld [vmem:[%s3 + $0x44] sm:$0xf]
    %v2213 = vld [vmem:[%s3 + $0x48] sm:$0xf]
    %v2214 = vld [vmem:[%s3 + $0x4c] sm:$0xf]
    %v2215 = vld [vmem:[%s3 + $0x50] sm:$0xf]
    %v2216 = vld [vmem:[%s3 + $0x54] sm:$0xf]
    %v2217 = vld [vmem:[%s3 + $0x58] sm:$0xf]
    %v2218 = vld [vmem:[%s3 + $0x5c] sm:$0xf]
    %v2219 = vld [vmem:[%s3 + $0x60] sm:$0xf]
    %v2220 = vld [vmem:[%s3 + $0x64] sm:$0xf]
    %v2221 = vld [vmem:[%s3 + $0x68] sm:$0xf]
    %v2222 = vld [vmem:[%s3 + $0x6c] sm:$0xf]
    %v2223 = vld [vmem:[%s3 + $0x70] sm:$0xf]
    %v2224 = vld [vmem:[%s3 + $0x74] sm:$0xf]
    %v2225 = vld [vmem:[%s3 + $0x78] sm:$0xf]
    %v2226 = vld [vmem:[%s3 + $0x7c] sm:$0xf]
    %v2227 = vld [vmem:[%s3 + $0x80] sm:$0xf]
    %v2228 = vld [vmem:[%s3 + $0x84] sm:$0xf]
    %v2229 = vld [vmem:[%s3 + $0x88] sm:$0xf]
    %v2230 = vld [vmem:[%s3 + $0x8c] sm:$0xf]
    %v2231 = vld [vmem:[%s3 + $0x90] sm:$0xf]
    %v2232 = vld [vmem:[%s3 + $0x94] sm:$0xf]
    %v2233 = vld [vmem:[%s3 + $0x98] sm:$0xf]
    %v2234 = vld [vmem:[%s3 + $0x9c] sm:$0xf]
    %v2235 = vld [vmem:[%s3 + $0xa0] sm:$0xf]
    %v2236 = vld [vmem:[%s3 + $0xa4] sm:$0xf]
    %v2237 = vld [vmem:[%s3 + $0xa8] sm:$0xf]
    %v2238 = vld [vmem:[%s3 + $0xac] sm:$0xf]
    %v2239 = vld [vmem:[%s3 + $0xb0] sm:$0xf]
    %v2240 = vld [vmem:[%s3 + $0xb4] sm:$0xf]
    %v2241 = vld [vmem:[%s3 + $0xb8] sm:$0xf]
    %v2242 = vld [vmem:[%s3 + $0xbc] sm:$0xf]
    %v2243 = vld [vmem:[%s3 + $0xc0] sm:$0xf]
    %v2244 = vld [vmem:[%s3 + $0xc4] sm:$0xf]
    %v2245 = vld [vmem:[%s3 + $0xc8] sm:$0xf]
    %v2246 = vld [vmem:[%s3 + $0xcc] sm:$0xf]
    %v2247 = vld [vmem:[%s3 + $0xd0] sm:$0xf]
    %v2248 = vld [vmem:[%s3 + $0xd4] sm:$0xf]
    %v2249 = vld [vmem:[%s3 + $0xd8] sm:$0xf]
    %v2250 = vld [vmem:[%s3 + $0xdc] sm:$0xf]
    %v2251 = vld [vmem:[%s3 + $0xe0] sm:$0xf]
    %v2252 = vld [vmem:[%s3 + $0xe4] sm:$0xf]
    %v2253 = vld [vmem:[%s3 + $0xe8] sm:$0xf]
    %v2254 = vld [vmem:[%s3 + $0xec] sm:$0xf]
    %v2255 = vld [vmem:[%s3 + $0xf0] sm:$0xf]
    %v2256 = vld [vmem:[%s3 + $0xf4] sm:$0xf]
    %v2257 = vld [vmem:[%s3 + $0xf8] sm:$0xf]
    %v2258 = vld [vmem:[%s3 + $0xfc] sm:$0xf]
    %v2259 = vld [vmem:[%s3 + $0x100] sm:$0xf]
    %v2260 = vld [vmem:[%s3 + $0x104] sm:$0xf]
    %v2261 = vld [vmem:[%s3 + $0x108] sm:$0xf]
    %v2262 = vld [vmem:[%s3 + $0x10c] sm:$0xf]
    %v2263 = vld [vmem:[%s3 + $0x110] sm:$0xf]
    %v2264 = vld [vmem:[%s3 + $0x114] sm:$0xf]
    %v2265 = vld [vmem:[%s3 + $0x118] sm:$0xf]
    %v2266 = vld [vmem:[%s3 + $0x11c] sm:$0xf]
    %v2267 = vld [vmem:[%s3 + $0x120] sm:$0xf]
    %v2268 = vld [vmem:[%s3 + $0x124] sm:$0xf]
    %v2269 = vld [vmem:[%s3 + $0x128] sm:$0xf]
    %v2270 = vld [vmem:[%s3 + $0x12c] sm:$0xf]
    %v2271 = vld [vmem:[%s3 + $0x130] sm:$0xf]
    %v2272 = vld [vmem:[%s3 + $0x134] sm:$0xf]
    %v2273 = vld [vmem:[%s3 + $0x138] sm:$0xf]
    %v2274 = vld [vmem:[%s3 + $0x13c] sm:$0xf]
    %v2275 = vld [vmem:[%s3 + $0x140] sm:$0xf]
    %v2276 = vld [vmem:[%s3 + $0x144] sm:$0xf]
    %v2277 = vld [vmem:[%s3 + $0x148] sm:$0xf]
    %v2278 = vld [vmem:[%s3 + $0x14c] sm:$0xf]
    %v2279 = vld [vmem:[%s3 + $0x150] sm:$0xf]
    %v2280 = vld [vmem:[%s3 + $0x154] sm:$0xf]
    %v2281 = vld [vmem:[%s3 + $0x158] sm:$0xf]
    %v2282 = vld [vmem:[%s3 + $0x15c] sm:$0xf]
    %v2283 = vld [vmem:[%s3 + $0x160] sm:$0xf]
    %v2284 = vld [vmem:[%s3 + $0x164] sm:$0xf]
    %v2285 = vld [vmem:[%s3 + $0x168] sm:$0xf]
    %v2286 = vld [vmem:[%s3 + $0x16c] sm:$0xf]
    %v2287 = vld [vmem:[%s3 + $0x170] sm:$0xf]
    %v2288 = vld [vmem:[%s3 + $0x174] sm:$0xf]
    %v2289 = vld [vmem:[%s3 + $0x178] sm:$0xf]
    %v2290 = vld [vmem:[%s3 + $0x17c] sm:$0xf]
    %v2291 = vld [vmem:[%s4] sm:$0x1]
    %v2293 = vlaneseq
    %v2294 = vshrl.u32 %v2293, 7
    %v2295 = vsub.s32 0, %v2294
    %v2296 = vrot.slane %v2291, %v2295
    %v2394 = vunpack.c.l.b16 %v2195
    %v2395 = vunpack.c.l.b16 %v2196
    %v2396 = vunpack.c.l.b16 %v2197
    %v2397 = vunpack.c.l.b16 %v2198
    %v2398 = vunpack.c.l.b16 %v2199
    %v2399 = vunpack.c.l.b16 %v2200
    %v2400 = vunpack.c.l.b16 %v2201
    %v2401 = vunpack.c.l.b16 %v2202
    %v2402 = vunpack.c.l.b16 %v2203
    %v2403 = vunpack.c.l.b16 %v2204
    %v2404 = vunpack.c.l.b16 %v2205
    %v2405 = vunpack.c.l.b16 %v2206
    %v2406 = vunpack.c.l.b16 %v2207
    %v2407 = vunpack.c.l.b16 %v2208
    %v2408 = vunpack.c.l.b16 %v2209
    %v2409 = vunpack.c.l.b16 %v2210
    %v2410 = vunpack.c.l.b16 %v2211
    %v2411 = vunpack.c.l.b16 %v2212
    %v2412 = vunpack.c.l.b16 %v2213
    %v2413 = vunpack.c.l.b16 %v2214
    %v2414 = vunpack.c.l.b16 %v2215
    %v2415 = vunpack.c.l.b16 %v2216
    %v2416 = vunpack.c.l.b16 %v2217
    %v2417 = vunpack.c.l.b16 %v2218
    %v2418 = vunpack.c.l.b16 %v2219
    %v2419 = vunpack.c.l.b16 %v2220
    %v2420 = vunpack.c.l.b16 %v2221
    %v2421 = vunpack.c.l.b16 %v2222
    %v2422 = vunpack.c.l.b16 %v2223
    %v2423 = vunpack.c.l.b16 %v2224
    %v2424 = vunpack.c.l.b16 %v2225
    %v2425 = vunpack.c.l.b16 %v2226
    %v2426 = vunpack.c.l.b16 %v2227
    %v2427 = vunpack.c.l.b16 %v2228
    %v2428 = vunpack.c.l.b16 %v2229
    %v2429 = vunpack.c.l.b16 %v2230
    %v2430 = vunpack.c.l.b16 %v2231
    %v2431 = vunpack.c.l.b16 %v2232
    %v2432 = vunpack.c.l.b16 %v2233
    %v2433 = vunpack.c.l.b16 %v2234
    %v2434 = vunpack.c.l.b16 %v2235
    %v2435 = vunpack.c.l.b16 %v2236
    %v2436 = vunpack.c.l.b16 %v2237
    %v2437 = vunpack.c.l.b16 %v2238
    %v2438 = vunpack.c.l.b16 %v2239
    %v2439 = vunpack.c.l.b16 %v2240
    %v2440 = vunpack.c.l.b16 %v2241
    %v2441 = vunpack.c.l.b16 %v2242
    %v2442 = vunpack.c.l.b16 %v2243
    %v2443 = vunpack.c.l.b16 %v2244
    %v2444 = vunpack.c.l.b16 %v2245
    %v2445 = vunpack.c.l.b16 %v2246
    %v2446 = vunpack.c.l.b16 %v2247
    %v2447 = vunpack.c.l.b16 %v2248
    %v2448 = vunpack.c.l.b16 %v2249
    %v2449 = vunpack.c.l.b16 %v2250
    %v2450 = vunpack.c.l.b16 %v2251
    %v2451 = vunpack.c.l.b16 %v2252
    %v2452 = vunpack.c.l.b16 %v2253
    %v2453 = vunpack.c.l.b16 %v2254
    %v2454 = vunpack.c.l.b16 %v2255
    %v2455 = vunpack.c.l.b16 %v2256
    %v2456 = vunpack.c.l.b16 %v2257
    %v2457 = vunpack.c.l.b16 %v2258
    %v2458 = vunpack.c.l.b16 %v2259
    %v2459 = vunpack.c.l.b16 %v2260
    %v2460 = vunpack.c.l.b16 %v2261
    %v2461 = vunpack.c.l.b16 %v2262
    %v2462 = vunpack.c.l.b16 %v2263
    %v2463 = vunpack.c.l.b16 %v2264
    %v2464 = vunpack.c.l.b16 %v2265
    %v2465 = vunpack.c.l.b16 %v2266
    %v2466 = vunpack.c.l.b16 %v2267
    %v2467 = vunpack.c.l.b16 %v2268
    %v2468 = vunpack.c.l.b16 %v2269
    %v2469 = vunpack.c.l.b16 %v2270
    %v2470 = vunpack.c.l.b16 %v2271
    %v2471 = vunpack.c.l.b16 %v2272
    %v2472 = vunpack.c.l.b16 %v2273
    %v2473 = vunpack.c.l.b16 %v2274
    %v2474 = vunpack.c.l.b16 %v2275
    %v2475 = vunpack.c.l.b16 %v2276
    %v2476 = vunpack.c.l.b16 %v2277
    %v2477 = vunpack.c.l.b16 %v2278
    %v2478 = vunpack.c.l.b16 %v2279
    %v2479 = vunpack.c.l.b16 %v2280
    %v2480 = vunpack.c.l.b16 %v2281
    %v2481 = vunpack.c.l.b16 %v2282
    %v2482 = vunpack.c.l.b16 %v2283
    %v2483 = vunpack.c.l.b16 %v2284
    %v2484 = vunpack.c.l.b16 %v2285
    %v2485 = vunpack.c.l.b16 %v2286
    %v2486 = vunpack.c.l.b16 %v2287
    %v2487 = vunpack.c.l.b16 %v2288
    %v2488 = vunpack.c.l.b16 %v2289
    %v2489 = vunpack.c.l.b16 %v2290
    %v2490 = vpack.c.b16 %v2395, %v2394
    %v2491 = vpack.c.b16 %v2397, %v2396
    %v2492 = vpack.c.b16 %v2399, %v2398
    %v2493 = vpack.c.b16 %v2401, %v2400
    %v2494 = vpack.c.b16 %v2403, %v2402
    %v2495 = vpack.c.b16 %v2405, %v2404
    %v2496 = vpack.c.b16 %v2407, %v2406
    %v2497 = vpack.c.b16 %v2409, %v2408
    %v2498 = vpack.c.b16 %v2411, %v2410
    %v2499 = vpack.c.b16 %v2413, %v2412
    %v2500 = vpack.c.b16 %v2415, %v2414
    %v2501 = vpack.c.b16 %v2417, %v2416
    %v2502 = vpack.c.b16 %v2419, %v2418
    %v2503 = vpack.c.b16 %v2421, %v2420
    %v2504 = vpack.c.b16 %v2423, %v2422
    %v2505 = vpack.c.b16 %v2425, %v2424
    %v2506 = vpack.c.b16 %v2427, %v2426
    %v2507 = vpack.c.b16 %v2429, %v2428
    %v2508 = vpack.c.b16 %v2431, %v2430
    %v2509 = vpack.c.b16 %v2433, %v2432
    %v2510 = vpack.c.b16 %v2435, %v2434
    %v2511 = vpack.c.b16 %v2437, %v2436
    %v2512 = vpack.c.b16 %v2439, %v2438
    %v2513 = vpack.c.b16 %v2441, %v2440
    %v2514 = vpack.c.b16 %v2443, %v2442
    %v2515 = vpack.c.b16 %v2445, %v2444
    %v2516 = vpack.c.b16 %v2447, %v2446
    %v2517 = vpack.c.b16 %v2449, %v2448
    %v2518 = vpack.c.b16 %v2451, %v2450
    %v2519 = vpack.c.b16 %v2453, %v2452
    %v2520 = vpack.c.b16 %v2455, %v2454
    %v2521 = vpack.c.b16 %v2457, %v2456
    %v2522 = vpack.c.b16 %v2459, %v2458
    %v2523 = vpack.c.b16 %v2461, %v2460
    %v2524 = vpack.c.b16 %v2463, %v2462
    %v2525 = vpack.c.b16 %v2465, %v2464
    %v2526 = vpack.c.b16 %v2467, %v2466
    %v2527 = vpack.c.b16 %v2469, %v2468
    %v2528 = vpack.c.b16 %v2471, %v2470
    %v2529 = vpack.c.b16 %v2473, %v2472
    %v2530 = vpack.c.b16 %v2475, %v2474
    %v2531 = vpack.c.b16 %v2477, %v2476
    %v2532 = vpack.c.b16 %v2479, %v2478
    %v2533 = vpack.c.b16 %v2481, %v2480
    %v2534 = vpack.c.b16 %v2483, %v2482
    %v2535 = vpack.c.b16 %v2485, %v2484
    %v2536 = vpack.c.b16 %v2487, %v2486
    %v2537 = vpack.c.b16 %v2489, %v2488
    %2586 = vmatprep.subr.bf16.mxu0 0
    %2587 = vmatpush1.bf16.msra.mxu0 %v2490
    %2588 = vmatprep.subr.bf16.mxu0 0
    %2589 = vmatpush1.bf16.msra.mxu0 %v2491
    %2590 = vmatprep.subr.bf16.mxu0 0
    %2591 = vmatpush1.bf16.msra.mxu0 %v2492
    %2592 = vmatprep.subr.bf16.mxu0 0
    %2593 = vmatpush1.bf16.msra.mxu0 %v2493
    %2594 = vmatprep.subr.bf16.mxu0 0
    %2595 = vmatpush1.bf16.msra.mxu0 %v2494
    %2596 = vmatprep.subr.bf16.mxu0 0
    %2597 = vmatpush1.bf16.msra.mxu0 %v2495
    %2598 = vmatprep.subr.bf16.mxu0 0
    %2599 = vmatpush1.bf16.msra.mxu0 %v2496
    %2600 = vmatprep.subr.bf16.mxu0 0
    %2601 = vmatpush1.bf16.msra.mxu0 %v2497
    %2602 = vmatprep.subr.bf16.mxu0 0
    %2603 = vmatpush1.bf16.msra.mxu0 %v2498
    %2604 = vmatprep.subr.bf16.mxu0 0
    %2605 = vmatpush1.bf16.msra.mxu0 %v2499
    %2606 = vmatprep.subr.bf16.mxu0 0
    %2607 = vmatpush1.bf16.msra.mxu0 %v2500
    %2608 = vmatprep.subr.bf16.mxu0 0
    %2609 = vmatpush1.bf16.msra.mxu0 %v2501
    %2610 = vmatprep.subr.bf16.mxu0 0
    %2611 = vmatpush1.bf16.msra.mxu0 %v2502
    %2612 = vmatprep.subr.bf16.mxu0 0
    %2613 = vmatpush1.bf16.msra.mxu0 %v2503
    %2614 = vmatprep.subr.bf16.mxu0 0
    %2615 = vmatpush1.bf16.msra.mxu0 %v2504
    %2616 = vmatprep.subr.bf16.mxu0 0
    %2617 = vmatpush1.bf16.msra.mxu0 %v2505
    %2618 = vmatprep.mubr.bf16.mxu0 %v43
    %2619 = vmatmul.mubr.bf16.gmra.mrb[0].mxu0 %v42
    %v2620 = vpop.f32.mrb[0].mxu0
    %v2621 = vadd.f32 %v2296, %v2620
    %v2622 = vpop.f32.mrb[0].mxu0
    %v2623 = vpop.f32.mrb[0].mxu0
    %v2624 = vadd.f32 %v2296, %v2623
    %v2625 = vpop.f32.mrb[0].mxu0
    %2626 = vdwg.mxu0
    %2627 = vmatprep.subr.bf16.mxu0 0
    %2628 = vmatpush1.bf16.msra.mxu0 %v2506
    %2629 = vmatprep.subr.bf16.mxu0 0
    %2630 = vmatpush1.bf16.msra.mxu0 %v2507
    %2631 = vmatprep.subr.bf16.mxu0 0
    %2632 = vmatpush1.bf16.msra.mxu0 %v2508
    %2633 = vmatprep.subr.bf16.mxu0 0
    %2634 = vmatpush1.bf16.msra.mxu0 %v2509
    %2635 = vmatprep.subr.bf16.mxu0 0
    %2636 = vmatpush1.bf16.msra.mxu0 %v2510
    %2637 = vmatprep.subr.bf16.mxu0 0
    %2638 = vmatpush1.bf16.msra.mxu0 %v2511
    %2639 = vmatprep.subr.bf16.mxu0 0
    %2640 = vmatpush1.bf16.msra.mxu0 %v2512
    %2641 = vmatprep.subr.bf16.mxu0 0
    %2642 = vmatpush1.bf16.msra.mxu0 %v2513
    %2643 = vmatprep.subr.bf16.mxu0 0
    %2644 = vmatpush1.bf16.msra.mxu0 %v2514
    %2645 = vmatprep.subr.bf16.mxu0 0
    %2646 = vmatpush1.bf16.msra.mxu0 %v2515
    %2647 = vmatprep.subr.bf16.mxu0 0
    %2648 = vmatpush1.bf16.msra.mxu0 %v2516
    %2649 = vmatprep.subr.bf16.mxu0 0
    %2650 = vmatpush1.bf16.msra.mxu0 %v2517
    %2651 = vmatprep.subr.bf16.mxu0 0
    %2652 = vmatpush1.bf16.msra.mxu0 %v2518
    %2653 = vmatprep.subr.bf16.mxu0 0
    %2654 = vmatpush1.bf16.msra.mxu0 %v2519
    %2655 = vmatprep.subr.bf16.mxu0 0
    %2656 = vmatpush1.bf16.msra.mxu0 %v2520
    %2657 = vmatprep.subr.bf16.mxu0 0
    %2658 = vmatpush1.bf16.msra.mxu0 %v2521
    %2659 = vmatprep.mubr.bf16.mxu0 %v45
    %2660 = vmatmul.mubr.bf16.gmra.mrb[0].mxu0 %v44
    %v2661 = vpop.f32.mrb[0].mxu0
    %v2662 = vadd.f32 %v2621, %v2661
    %v2663 = vpop.f32.mrb[0].mxu0
    %v2664 = vpop.f32.mrb[0].mxu0
    %v2665 = vadd.f32 %v2624, %v2664
    %v2666 = vpop.f32.mrb[0].mxu0
    %2667 = vdwg.mxu0
    %2668 = vmatprep.subr.bf16.mxu0 0
    %2669 = vmatpush1.bf16.msra.mxu0 %v2522
    %2670 = vmatprep.subr.bf16.mxu0 0
    %2671 = vmatpush1.bf16.msra.mxu0 %v2523
    %2672 = vmatprep.subr.bf16.mxu0 0
    %2673 = vmatpush1.bf16.msra.mxu0 %v2524
    %2674 = vmatprep.subr.bf16.mxu0 0
    %2675 = vmatpush1.bf16.msra.mxu0 %v2525
    %2676 = vmatprep.subr.bf16.mxu0 0
    %2677 = vmatpush1.bf16.msra.mxu0 %v2526
    %2678 = vmatprep.subr.bf16.mxu0 0
    %2679 = vmatpush1.bf16.msra.mxu0 %v2527
    %2680 = vmatprep.subr.bf16.mxu0 0
    %2681 = vmatpush1.bf16.msra.mxu0 %v2528
    %2682 = vmatprep.subr.bf16.mxu0 0
    %2683 = vmatpush1.bf16.msra.mxu0 %v2529
    %2684 = vmatprep.subr.bf16.mxu0 0
    %2685 = vmatpush1.bf16.msra.mxu0 %v2530
    %2686 = vmatprep.subr.bf16.mxu0 0
    %2687 = vmatpush1.bf16.msra.mxu0 %v2531
    %2688 = vmatprep.subr.bf16.mxu0 0
    %2689 = vmatpush1.bf16.msra.mxu0 %v2532
    %2690 = vmatprep.subr.bf16.mxu0 0
    %2691 = vmatpush1.bf16.msra.mxu0 %v2533
    %2692 = vmatprep.subr.bf16.mxu0 0
    %2693 = vmatpush1.bf16.msra.mxu0 %v2534
    %2694 = vmatprep.subr.bf16.mxu0 0
    %2695 = vmatpush1.bf16.msra.mxu0 %v2535
    %2696 = vmatprep.subr.bf16.mxu0 0
    %2697 = vmatpush1.bf16.msra.mxu0 %v2536
    %2698 = vmatprep.subr.bf16.mxu0 0
    %2699 = vmatpush1.bf16.msra.mxu0 %v2537
    %2700 = vmatprep.mubr.bf16.mxu0 %v47
    %2701 = vmatmul.mubr.bf16.gmra.mrb[0].mxu0 %v46
    %v2702 = vpop.f32.mrb[0].mxu0
    %v2703 = vadd.f32 %v2662, %v2702
    %v2704 = vpop.f32.mrb[0].mxu0
    %v2705 = vpop.f32.mrb[0].mxu0
    %v2706 = vadd.f32 %v2665, %v2705
    %v2707 = vpop.f32.mrb[0].mxu0
    %2708 = vdwg.mxu0
    %v2709 = vmax.f32 %v2703, 0.0
    %v2710 = vmax.f32 %v2706, 0.0
    %v2711 = vld [vmem:[%s5] sm:$0x1]
    %v2713 = vlaneseq
    %v2714 = vshrl.u32 %v2713, 7
    %v2715 = vsub.s32 0, %v2714
    %v2716 = vrot.slane %v2711, %v2715
    %v2718 = vmul.f32 %v2709, %v2716
    %v2719 = vmul.f32 %v2710, %v2716
    %2720 = vadd.xlane.f32.xlu0 %v2718
    %v2721 = vpop.xlane.xlu0 %2720
    %2722 = vadd.xlane.f32.xlu0 %v2719
    %v2723 = vpop.xlane.xlu0 %2722
    %v2724 = vld [vmem:[#allocation2] sm:$0x1]
    %v2726 = vlaneseq
    %v2727 = vshrl.u32 %v2726, 7
    %v2728 = vsub.s32 0, %v2727
    %v2729 = vrot.slane %v2724, %v2728
    %v2731 = vadd.f32 %v2721, %v2729
    %v2732 = vadd.f32 %v2723, %v2729
    %2734 = vset.pattern.permute.xlu0 0
    %2735 = vperm.xlu0 %2734, %v2731
    %v2736 = vpop.permute.xlu0 %2735
    %2739 = vset.pattern.permute.xlu0 0
    %2740 = vperm.xlu0 %2739, %v2732
    %v2741 = vpop.permute.xlu0 %2740
    %v2743 = vmul.f32 %v1929, %v2736
    %v2744 = vmul.f32 %v1931, %v2736
    %v2745 = vmul.f32 %v2058, %v2736
    %v2746 = vmul.f32 %v2060, %v2736
    %v2747 = vmul.f32 %v2187, %v2736
    %v2748 = vmul.f32 %v2189, %v2736
    %v2749 = vmul.f32 %v1933, %v2741
    %v2750 = vmul.f32 %v1935, %v2741
    %v2751 = vmul.f32 %v2062, %v2741
    %v2752 = vmul.f32 %v2064, %v2741
    %v2753 = vmul.f32 %v2191, %v2741
    %v2754 = vmul.f32 %v2193, %v2741
    %v2755 = vadd.f32 %v30, %v2743
    %v2756 = vadd.f32 %v31, %v2744
    %v2757 = vadd.f32 %v32, %v2745
    %v2758 = vadd.f32 %v33, %v2746
    %v2759 = vadd.f32 %v34, %v2747
    %v2760 = vadd.f32 %v35, %v2748
    %v2761 = vadd.f32 %v36, %v2749
    %v2762 = vadd.f32 %v37, %v2750
    %v2763 = vadd.f32 %v38, %v2751
    %v2764 = vadd.f32 %v39, %v2752
    %v2765 = vadd.f32 %v40, %v2753
    %v2766 = vadd.f32 %v41, %v2754
    %2767 = vst [vmem:[#allocation3] sm:$0xff] %v2755
    %2768 = vst [vmem:[#allocation3 + $0x8] sm:$0xff] %v2756
    %2769 = vst [vmem:[#allocation3 + $0x10] sm:$0xff] %v2757
    %2770 = vst [vmem:[#allocation3 + $0x18] sm:$0xff] %v2758
    %2771 = vst [vmem:[#allocation3 + $0x20] sm:$0xff] %v2759
    %2772 = vst [vmem:[#allocation3 + $0x28] sm:$0xff] %v2760
    %2773 = vst [vmem:[#allocation3 + $0x30] sm:$0xff] %v2761
    %2774 = vst [vmem:[#allocation3 + $0x38] sm:$0xff] %v2762
    %2775 = vst [vmem:[#allocation3 + $0x40] sm:$0xff] %v2763
    %2776 = vst [vmem:[#allocation3 + $0x48] sm:$0xff] %v2764
    %2777 = vst [vmem:[#allocation3 + $0x50] sm:$0xff] %v2765
    %2778 = vst [vmem:[#allocation3 + $0x58] sm:$0xff] %v2766
    // Predicated region
    $region30: #{net_forward.1} parent=1 // pred_check
      _
    $region31: #{net_forward.1} parent=1 // pred_check_branch
      %2780 = sbr.rel (0) target = $region33
    $region32: #{net_forward.1} parent=1 // pred_region
      %s2782 = ssub.s32 1536, 1536
      %2783 = vsyncadd [#allocation4], %s2782
      %s2784 = sshll.u32 [#allocation3], 4
      %s2785 = int_to_ptr.vmem [resolvable:$true] %s2784
      %2790 = dma.vmem_to_hbm [thread:$0]  %s2785, 1536, %s7, [#allocation4], 768, 768, 48
    $region33: #{net_forward.1} parent=1 // pred_fallthru
      _
    // Predicated region
    $region34: #{net_forward.1} parent=1 // pred_check
      _
    $region35: #{net_forward.1} parent=1 // pred_check_branch
      %2792 = sbr.rel (0) target = $region37
    $region36: #{net_forward.1} parent=1 // pred_region
      %2793 = dma.done [#allocation4], 1536
    $region37: #{net_forward.1} parent=1 // pred_fallthru
      _
    %2794 = vsyncpa [#allocation4], 1

</llo_original>
